<compile_context>
chip_gen: v7x
topology: tpu7x:2x2x1
jax: 0.10.0
libtpu: 0.0.40
codegen_flags: <defaults>
</compile_context>

<pallas_src>
import math
from functools import partial

import numpy as np
import jax
import jax.numpy as jnp
from jax.experimental import pallas as pl
from jax.experimental.pallas import tpu as pltpu


_BN_EPS = 1e-5
_VMEM_LIMIT = 64 * 1024 * 1024  # fits v7x physical (64 MiB); worst fused call uses ~24 MiB


# ----------------------------------------------------------------------------
# helpers
# ----------------------------------------------------------------------------
def _round_up(x, m):
    return ((x + m - 1) // m) * m


def _full_block_spec(a):
    nd = a.ndim
    return pl.BlockSpec(a.shape, lambda i, _nd=nd: (0,) * _nd)


# ----------------------------------------------------------------------------
# Pallas kernels
# ----------------------------------------------------------------------------
def _make_matmul_kernel(relu, has_skip):
    """Single-K-step bf16 matmul (f32 result) + folded-BN bias (+ residual) (+ ReLU)."""

    def kernel(*refs):
        if has_skip:
            x_ref, w_ref, b_ref, s_ref, o_ref = refs
        else:
            x_ref, w_ref, b_ref, o_ref = refs
        y = jnp.dot(x_ref[...], w_ref[...], preferred_element_type=jnp.float32)
        y = y + b_ref[...]
        if has_skip:
            y = y + s_ref[...]
        if relu:
            y = jnp.maximum(y, 0.0)
        o_ref[...] = y.astype(o_ref.dtype)

    return kernel


def _make_bottleneck_kernel(has_down):
    """Whole bottleneck (conv1/conv2/conv3 + BN + residual + ReLU) in one kernel.

    conv2 (3x3, stride/dilation/zero-padding) is realized via 9 precomputed 0/1 gather
    matrices g[t] (Mo, Mi): patches_t = g[t] @ y1, y2 += patches_t @ W2[t].
    g[4] (the center tap) doubles as the strided sub-sampling matrix for the downsample conv.
    """

    def kernel(*refs):
        if has_down:
            (x_ref, g_ref, w1_ref, b1_ref, w2_ref, b2_ref,
             w3_ref, b3_ref, wd_ref, bd_ref, o_ref) = refs
        else:
            (x_ref, g_ref, w1_ref, b1_ref, w2_ref, b2_ref,
             w3_ref, b3_ref, o_ref) = refs

        x = x_ref[...].astype(jnp.bfloat16)                                  # (Mi, Cin)

        # conv1 (1x1) + bn1 + relu
        y1 = jnp.dot(x, w1_ref[...], preferred_element_type=jnp.float32)
        y1 = jnp.maximum(y1 + b1_ref[...], 0.0).astype(jnp.bfloat16)        # (Mi, C)

        # conv2 (3x3 dilated/strided) + bn2 + relu
        mo = g_ref.shape[1]
        c = w2_ref.shape[2]
        acc = jnp.zeros((mo, c), jnp.float32)
        for t in range(9):
            p = jnp.dot(g_ref[t], y1, preferred_element_type=jnp.float32)    # exact gather
            acc = acc + jnp.dot(p.astype(jnp.bfloat16), w2_ref[t],
                                preferred_element_type=jnp.float32)
        y2 = jnp.maximum(acc + b2_ref[...], 0.0).astype(jnp.bfloat16)        # (Mo, C)

        # conv3 (1x1) + bn3
        y3 = jnp.dot(y2, w3_ref[...], preferred_element_type=jnp.float32) + b3_ref[...]

        # residual path
        if has_down:
            xs = jnp.dot(g_ref[4], x, preferred_element_type=jnp.float32)    # strided subsample
            skip = jnp.dot(xs.astype(jnp.bfloat16), wd_ref[...],
                           preferred_element_type=jnp.float32) + bd_ref[...]
        else:
            skip = x_ref[...]                                                # identity (f32)

        o_ref[...] = jnp.maximum(y3 + skip, 0.0).astype(o_ref.dtype)

    return kernel


# ----------------------------------------------------------------------------
# generic conv-as-matmul path (stem / block1 / block2)
# ----------------------------------------------------------------------------
def fused_matmul_bias(x, w, b, ccfg, skip, relu):
    """y = act((x @ w) + b [+ skip]); w:(Kp,Np) bf16 (BN folded), b:(1,Np) f32, out f32."""
    M, K = x.shape
    Kp, Np, N = ccfg["Kp"], ccfg["Np"], ccfg["N"]

    M8 = _round_up(M, 8)
    tm = M8 if M8 <= 1024 else 1024
    Mp = _round_up(M8, tm)
    tn = 256 if Np % 256 == 0 else 128

    xp = x.astype(jnp.bfloat16)
    if (Mp, Kp) != (M, K):
        xp = jnp.pad(xp, ((0, Mp - M), (0, Kp - K)))

    in_specs = [
        pl.BlockSpec((tm, Kp), lambda i, j: (i, 0)),
        pl.BlockSpec((Kp, tn), lambda i, j: (0, j)),
        pl.BlockSpec((1, tn), lambda i, j: (0, j)),
    ]
    args = [xp, w, b]
    has_skip = skip is not None
    if has_skip:
        sp = skip.astype(jnp.float32)
        if (Mp, Np) != sp.shape:
            sp = jnp.pad(sp, ((0, Mp - M), (0, Np - N)))
        in_specs.append(pl.BlockSpec((tm, tn), lambda i, j: (i, j)))
        args.append(sp)

    flops = 2 * Mp * Kp * Np
    nbytes = (Mp * Kp + Kp * Np) * 2 + Np * 4 + Mp * Np * 4 * (2 if has_skip else 1)

    out = pl.pallas_call(
        _make_matmul_kernel(relu, has_skip),
        out_shape=jax.ShapeDtypeStruct((Mp, Np), jnp.float32),
        grid_spec=pltpu.PrefetchScalarGridSpec(
            num_scalar_prefetch=0,
            grid=(Mp // tm, Np // tn),
            in_specs=in_specs,
            out_specs=pl.BlockSpec((tm, tn), lambda i, j: (i, j)),
        ),
        compiler_params=pltpu.CompilerParams(
            dimension_semantics=("parallel", "parallel"),
            vmem_limit_bytes=_VMEM_LIMIT,
        ),
        cost_estimate=pl.CostEstimate(flops=int(flops), transcendentals=0,
                                      bytes_accessed=int(nbytes)),
    )(*args)
    return out[:M, :N]


def conv_bn(ccfg, carr, x, *, stride=1, dilation=1, padding=0, relu=False, skip=None):
    """x: NHWC f32; im2col in XLA + Pallas matmul (BN folded into w/b)."""
    k = ccfg["k"]
    Nb, H, W, Cin = x.shape
    Cout = ccfg["N"]

    if k == 1:
        xs = x[:, ::stride, ::stride, :]
        Ho, Wo = xs.shape[1], xs.shape[2]
        patches = xs.reshape(Nb * Ho * Wo, Cin)
    else:
        xp = jnp.pad(x, ((0, 0), (padding, padding), (padding, padding), (0, 0)))
        Hp, Wp = H + 2 * padding, W + 2 * padding
        Ho = (Hp - dilation * (k - 1) - 1) // stride + 1
        Wo = (Wp - dilation * (k - 1) - 1) // stride + 1
        cols = []
        for i in range(k):
            for j in range(k):
                cols.append(
                    xp[:, i * dilation: i * dilation + stride * (Ho - 1) + 1: stride,
                          j * dilation: j * dilation + stride * (Wo - 1) + 1: stride, :])
        patches = jnp.stack(cols, axis=3).reshape(Nb * Ho * Wo, k * k * Cin)

    skip2d = None if skip is None else skip.reshape(Nb * Ho * Wo, Cout)
    y = fused_matmul_bias(patches, carr["w"], carr["b"], ccfg, skip2d, relu)
    return y.reshape(Nb, Ho, Wo, Cout)


def conv_bottleneck(bcfg, barr, x, stride, dilation):
    if bcfg["down"] is not None:
        skip = conv_bn(bcfg["down"], barr["down"], x, stride=stride, relu=False)
    else:
        skip = x
    y = conv_bn(bcfg["c1"], barr["c1"], x, relu=True)
    y = conv_bn(bcfg["c2"], barr["c2"], y, stride=stride, dilation=dilation,
                padding=dilation, relu=True)
    y = conv_bn(bcfg["c3"], barr["c3"], y, relu=True, skip=skip)
    return y


# ----------------------------------------------------------------------------
# fully fused bottleneck path (block3 / block4)
# ----------------------------------------------------------------------------
def _gather_mats(Nb, H, W, stride, dilation):
    """0/1 tap-gather matrices for a 3x3 conv with padding=dilation (PyTorch semantics)."""
    Ho = (H - 1) // stride + 1
    Wo = (W - 1) // stride + 1
    Mo, Mi = Nb * Ho * Wo, Nb * H * W
    Mop, Mip = _round_up(Mo, 8), _round_up(Mi, 8)
    g = np.zeros((9, Mop, Mip), np.float32)
    for n in range(Nb):
        for ho in range(Ho):
            for wo in range(Wo):
                mo = (n * Ho + ho) * Wo + wo
                for i in range(3):
                    hi = ho * stride + (i - 1) * dilation
                    if hi < 0 or hi >= H:
                        continue
                    for j in range(3):
                        wi = wo * stride + (j - 1) * dilation
                        if wi < 0 or wi >= W:
                            continue
                        g[i * 3 + j, mo, (n * H + hi) * W + wi] = 1.0
    return jnp.asarray(g, jnp.bfloat16), Ho, Wo, Mo, Mi


def fused_bottleneck(bcfg, barr, x, stride, dilation):
    Nb, H, W, Cin = x.shape
    C, C4 = bcfg["c"], bcfg["c4"]
    has_down = bcfg["down"]

    g, Ho, Wo, Mo, Mi = _gather_mats(Nb, H, W, stride, dilation)
    Mop, Mip = g.shape[1], g.shape[2]

    x2d = x.reshape(Mi, Cin)
    if Mip != Mi:
        x2d = jnp.pad(x2d, ((0, Mip - Mi), (0, 0)))

    args = [x2d, g, barr["w1"], barr["b1"], barr["w2"], barr["b2"],
            barr["w3"], barr["b3"]]
    if has_down:
        args += [barr["wd"], barr["bd"]]

    flops = 2 * (Mip * Cin * C + 9 * (Mop * Mip * C + Mop * C * C) + Mop * C * C4)
    if has_down:
        flops += 2 * (Mop * Mip * Cin + Mop * Cin * C4)
    nbytes = sum(int(a.size) * a.dtype.itemsize for a in args) + Mop * C4 * 4

    out = pl.pallas_call(
        _make_bottleneck_kernel(has_down),
        out_shape=jax.ShapeDtypeStruct((Mop, C4), jnp.float32),
        grid_spec=pltpu.PrefetchScalarGridSpec(
            num_scalar_prefetch=0,
            grid=(1,),
            in_specs=[_full_block_spec(a) for a in args],
            out_specs=pl.BlockSpec((Mop, C4), lambda i: (0, 0)),
        ),
        compiler_params=pltpu.CompilerParams(
            dimension_semantics=("arbitrary",),
            vmem_limit_bytes=_VMEM_LIMIT,
        ),
        cost_estimate=pl.CostEstimate(flops=int(flops), transcendentals=0,
                                      bytes_accessed=int(nbytes)),
    )(*args)
    return out[:Mo].reshape(Nb, Ho, Wo, C4)


# ----------------------------------------------------------------------------
# maxpool (plain XLA per review: tiny tensor, not worth a kernel)
# ----------------------------------------------------------------------------
def max_pool_3x3_s2_p1(x):
    Nb, H, W, C = x.shape
    neg = jnp.finfo(x.dtype).min
    xp = jnp.pad(x, ((0, 0), (1, 1), (1, 1), (0, 0)), constant_values=neg)
    Ho = (H + 2 - 3) // 2 + 1
    Wo = (W + 2 - 3) // 2 + 1
    out = None
    for i in range(3):
        for j in range(3):
            s = xp[:, i: i + 2 * (Ho - 1) + 1: 2, j: j + 2 * (Wo - 1) + 1: 2, :]
            out = s if out is None else jnp.maximum(out, s)
    return out


# ----------------------------------------------------------------------------
# deterministic raw parameter construction (ResNet101 architecture shapes)
# ----------------------------------------------------------------------------
class ParamGen:
    def __init__(self, seed=0):
        self.rng = np.random.RandomState(seed)

    def normal(self, shape, std=1.0):
        return (std * self.rng.standard_normal(shape)).astype(np.float32)


def conv_bn_params(gen, cin, cout, k):
    fan_in = k * k * cin
    return dict(
        k=k,
        w=gen.normal((k, k, cin, cout), std=math.sqrt(2.0 / fan_in)),
        gamma=(1.0 + gen.normal((cout,), 0.05)).astype(np.float32),
        beta=gen.normal((cout,), 0.05),
        mean=gen.normal((cout,), 0.05),
        var=np.ones((cout,), np.float32),
    )


def bottleneck_params(gen, cin, cout, downsample):
    return dict(
        c1=conv_bn_params(gen, cin, cout, 1),
        c2=conv_bn_params(gen, cout, cout, 3),
        c3=conv_bn_params(gen, cout, cout * 4, 1),
        down=conv_bn_params(gen, cin, cout * 4, 1) if downsample else None,
    )


def resnet_block_params(gen, cin, cout, n_blocks):
    blocks = [bottleneck_params(gen, cin, cout, True)]
    for _ in range(n_blocks - 1):
        blocks.append(bottleneck_params(gen, cout * 4, cout, False))
    return blocks


def build_params(output_stride=16, multi_grid=(1, 2, 4), seed=0):
    gen = ParamGen(seed)
    p = dict(
        stem=conv_bn_params(gen, 3, 64, 7),
        block1=dict(blocks=resnet_block_params(gen, 64, 64, 3), stride=1, dils=[1] * 3),
        block2=dict(blocks=resnet_block_params(gen, 256, 128, 4), stride=2, dils=[1] * 4),
    )
    if output_stride == 16:
        p["block3"] = dict(blocks=resnet_block_params(gen, 512, 256, 23), stride=2, dils=[1] * 23)
        rate = 2
    else:  # output_stride == 8
        p["block3"] = dict(blocks=resnet_block_params(gen, 512, 256, 23), stride=1,
                           dils=[2] + [1] * 22)
        rate = 4
    p["block4"] = dict(blocks=resnet_block_params(gen, 1024, 512, 3), stride=1,
                       dils=[rate * g for g in multi_grid])
    return p


# ----------------------------------------------------------------------------
# parameter preparation: fold BN, reshape, pad, cast bf16
# ----------------------------------------------------------------------------
def _fold_bn(rc):
    scale = rc["gamma"] / np.sqrt(rc["var"] + _BN_EPS)
    bias = rc["beta"] - rc["mean"] * scale
    return scale.astype(np.float32), bias.astype(np.float32)


def prep_conv2d(raw):
    w = raw["w"]
    kh, kw, cin, cout = w.shape
    K = kh * kw * cin
    scale, bias = _fold_bn(raw)
    w2d = w.reshape(K, cout) * scale[None, :]
    Kp, Np = _round_up(K, 128), _round_up(cout, 128)
    w2d = np.pad(w2d, ((0, Kp - K), (0, Np - cout)))
    b = np.pad(bias, (0, Np - cout)).reshape(1, Np)
    cfg = dict(k=kh, K=K, N=int(cout), Kp=int(Kp), Np=int(Np))
    arr = dict(w=jnp.asarray(w2d, jnp.bfloat16), b=jnp.asarray(b, jnp.float32))
    return cfg, arr


def prep_bottleneck_conv(raw_bn):
    cfg, arr = {}, {}
    for key in ("c1", "c2", "c3"):
        cfg[key], arr[key] = prep_conv2d(raw_bn[key])
    if raw_bn["down"] is not None:
        cfg["down"], arr["down"] = prep_conv2d(raw_bn["down"])
    else:
        cfg["down"] = None
    return cfg, arr


def prep_bottleneck_fused(raw_bn):
    def fold(rc):
        scale, bias = _fold_bn(rc)
        return rc["w"] * scale[None, None, None, :], bias

    w1, b1 = fold(raw_bn["c1"])
    w2, b2 = fold(raw_bn["c2"])
    w3, b3 = fold(raw_bn["c3"])
    cin, c = w1.shape[2], w1.shape[3]
    c4 = w3.shape[3]
    arr = dict(
        w1=jnp.asarray(w1.reshape(cin, c), jnp.bfloat16),
        b1=jnp.asarray(b1.reshape(1, c), jnp.float32),
        w2=jnp.asarray(w2.reshape(9, c, c), jnp.bfloat16),
        b2=jnp.asarray(b2.reshape(1, c), jnp.float32),
        w3=jnp.asarray(w3.reshape(c, c4), jnp.bfloat16),
        b3=jnp.asarray(b3.reshape(1, c4), jnp.float32),
    )
    cfg = dict(cin=int(cin), c=int(c), c4=int(c4), down=raw_bn["down"] is not None)
    if raw_bn["down"] is not None:
        wd, bd = fold(raw_bn["down"])
        arr["wd"] = jnp.asarray(wd.reshape(cin, c4), jnp.bfloat16)
        arr["bd"] = jnp.asarray(bd.reshape(1, c4), jnp.float32)
    return cfg, arr


def prep_block(raw_block, kind):
    blocks = raw_block["blocks"]
    dils = list(raw_block["dils"])
    stride = int(raw_block["stride"])
    prep = prep_bottleneck_conv if kind == "conv" else prep_bottleneck_fused

    first_cfg, first_arr = prep(blocks[0])
    rest = [prep(b) for b in blocks[1:]]
    can_scan = len(rest) >= 2 and all(d == dils[1] for d in dils[1:])

    cfg = dict(kind=kind, stride=stride, dils=dils, first=first_cfg, scan=can_scan)
    arr = dict(first=first_arr)
    if can_scan:
        cfg["rest"] = rest[0][0]
        arr["rest"] = jax.tree_util.tree_map(lambda *xs: jnp.stack(xs), *[a for _, a in rest])
    else:
        cfg["rest"] = [c for c, _ in rest]
        arr["rest"] = [a for _, a in rest]
    return cfg, arr


def prepare_params(raw):
    cfg, arr = {}, {}
    cfg["stem"], arr["stem"] = prep_conv2d(raw["stem"])
    for name, kind in (("block1", "conv"), ("block2", "conv"),
                       ("block3", "fused"), ("block4", "fused")):
        cfg[name], arr[name] = prep_block(raw[name], kind)
    return cfg, arr


# ----------------------------------------------------------------------------
# forward pass (single jax.jit; cfg is static Python data via closure)
# ----------------------------------------------------------------------------
def run_block(bcfg, barr, x):
    apply = conv_bottleneck if bcfg["kind"] == "conv" else fused_bottleneck
    x = apply(bcfg["first"], barr["first"], x, bcfg["stride"], bcfg["dils"][0])
    if bcfg["scan"]:
        rcfg, d = bcfg["rest"], bcfg["dils"][1]

        def body(h, w):
            return apply(rcfg, w, h, 1, d), None

        x, _ = jax.lax.scan(body, x, barr["rest"])
    else:
        for rcfg, ra, d in zip(bcfg["rest"], barr["rest"], bcfg["dils"][1:]):
            x = apply(rcfg, ra, x, 1, d)
    return x


def resnet101_backbone_forward(cfg, arrs, x_nchw):
    x = jnp.transpose(x_nchw, (0, 2, 3, 1)).astype(jnp.float32)      # NCHW -> NHWC
    x = conv_bn(cfg["stem"], arrs["stem"], x, stride=2, padding=3, relu=True)
    x = max_pool_3x3_s2_p1(x)
    x = run_block(cfg["block1"], arrs["block1"], x)
    x = run_block(cfg["block2"], arrs["block2"], x)
    x = run_block(cfg["block3"], arrs["block3"], x)
    x = run_block(cfg["block4"], arrs["block4"], x)
    return jnp.transpose(x, (0, 3, 1, 2)).astype(jnp.float32)        # NHWC -> NCHW


# ----------------------------------------------------------------------------
# self-check of the fused bottleneck kernel vs. an XLA conv reference
# ----------------------------------------------------------------------------
def _ref_conv_bn(rc, x, stride, dilation, padding, relu):
    scale, bias = _fold_bn(rc)
    y = jax.lax.conv_general_dilated(
        x, jnp.asarray(rc["w"]),
        window_strides=(stride, stride),
        padding=((padding, padding), (padding, padding)),
        rhs_dilation=(dilation, dilation),
        dimension_numbers=("NHWC", "HWIO", "NHWC"),
        precision=jax.lax.Precision.HIGHEST)
    y = y * jnp.asarray(scale)[None, None, None, :] + jnp.asarray(bias)[None, None, None, :]
    return jnp.maximum(y, 0.0) if relu else y


def _ref_bottleneck(raw_bn, x, stride, dilation):
    skip = _ref_conv_bn(raw_bn["down"], x, stride, 1, 0, False)
    y = _ref_conv_bn(raw_bn["c1"], x, 1, 1, 0, True)
    y = _ref_conv_bn(raw_bn["c2"], y, stride, dilation, dilation, True)
    y = _ref_conv_bn(raw_bn["c3"], y, 1, 1, 0, False)
    return jnp.maximum(y + skip, 0.0)


def _self_check():
    gen = ParamGen(123)
    raw_bn = bottleneck_params(gen, 128, 32, True)          # cin=128, c=32, c4=128
    x = jax.random.normal(jax.random.PRNGKey(1), (1, 8, 8, 128), dtype=jnp.float32)
    ref = _ref_bottleneck(raw_bn, x, stride=2, dilation=2)
    bcfg, barr = prep_bottleneck_fused(raw_bn)
    got = fused_bottleneck(bcfg, barr, x, 2, 2)
    err = float(jnp.max(jnp.abs(got - ref)) / (jnp.max(jnp.abs(ref)) + 1e-6))
    assert err < 0.05, f"fused bottleneck mismatch: rel err {err}"


# ----------------------------------------------------------------------------
if __name__ == "__main__":
    _self_check()

    key = jax.random.PRNGKey(0)
    # small image-backbone input: (N=2, C=3, H=64, W=64)
    x = jax.random.normal(key, (2, 3, 64, 64), dtype=jnp.float32)

    raw = build_params(output_stride=16, multi_grid=(1, 2, 4), seed=0)
    cfg, arrs = prepare_params(raw)
    del raw

    fwd = jax.jit(partial(resnet101_backbone_forward, cfg))
    out = jax.block_until_ready(fwd(arrs, x))

    # output_stride=16: 64/16 = 4 spatial, 2048 channels
    assert out.shape == (2, 2048, 4, 4), out.shape
    assert out.dtype == jnp.float32
    assert bool(jnp.all(jnp.isfinite(out)))
    print("KERNEL_OK")
</pallas_src>

<mosaic_0001>
module attributes {stable_mosaic.version = 11 : i64} {
  func.func @kernel(%arg0: i32, %arg1: memref<64x128xf32, #tpu.memory_space<vmem>>, %arg2: memref<9x16x64xbf16, #tpu.memory_space<vmem>>, %arg3: memref<128x32xbf16, #tpu.memory_space<vmem>>, %arg4: memref<1x32xf32, #tpu.memory_space<vmem>>, %arg5: memref<9x32x32xbf16, #tpu.memory_space<vmem>>, %arg6: memref<1x32xf32, #tpu.memory_space<vmem>>, %arg7: memref<32x128xbf16, #tpu.memory_space<vmem>>, %arg8: memref<1x128xf32, #tpu.memory_space<vmem>>, %arg9: memref<128x128xbf16, #tpu.memory_space<vmem>>, %arg10: memref<1x128xf32, #tpu.memory_space<vmem>>, %arg11: memref<16x128xf32, #tpu.memory_space<vmem>>) attributes {dimension_semantics = [#tpu.dimension_semantics<arbitrary>], iteration_bounds = array<i64: 1>, scalar_prefetch = 0 : i64, scratch_operands = 0 : i64, tpu.core_type = #tpu.core_type<tc>, window_params = [{pipeline_mode = #tpu.pipeline_mode<synchronous>, transform_indices = @transform_0, window_bounds = array<i64: 64, 128>}, {pipeline_mode = #tpu.pipeline_mode<synchronous>, transform_indices = @transform_1, window_bounds = array<i64: 9, 16, 64>}, {pipeline_mode = #tpu.pipeline_mode<synchronous>, transform_indices = @transform_2, window_bounds = array<i64: 128, 32>}, {pipeline_mode = #tpu.pipeline_mode<synchronous>, transform_indices = @transform_3, window_bounds = array<i64: 1, 32>}, {pipeline_mode = #tpu.pipeline_mode<synchronous>, transform_indices = @transform_4, window_bounds = array<i64: 9, 32, 32>}, {pipeline_mode = #tpu.pipeline_mode<synchronous>, transform_indices = @transform_5, window_bounds = array<i64: 1, 32>}, {pipeline_mode = #tpu.pipeline_mode<synchronous>, transform_indices = @transform_6, window_bounds = array<i64: 32, 128>}, {pipeline_mode = #tpu.pipeline_mode<synchronous>, transform_indices = @transform_7, window_bounds = array<i64: 1, 128>}, {pipeline_mode = #tpu.pipeline_mode<synchronous>, transform_indices = @transform_8, window_bounds = array<i64: 128, 128>}, {pipeline_mode = #tpu.pipeline_mode<synchronous>, transform_indices = @transform_9, window_bounds = array<i64: 1, 128>}, {pipeline_mode = #tpu.pipeline_mode<synchronous>, transform_indices = @transform_10, window_bounds = array<i64: 16, 128>}]} {
    %c0 = arith.constant 0 : index
    %c0_0 = arith.constant 0 : index
    %0 = vector.load %arg1[%c0, %c0_0] : memref<64x128xf32, #tpu.memory_space<vmem>>, vector<64x128xf32>
    %1 = arith.truncf %0 : vector<64x128xf32> to vector<64x128xbf16>
    %c0_1 = arith.constant 0 : index
    %c0_2 = arith.constant 0 : index
    %2 = vector.load %arg3[%c0_1, %c0_2] : memref<128x32xbf16, #tpu.memory_space<vmem>>, vector<128x32xbf16>
    %cst = arith.constant dense<0.000000e+00> : vector<64x32xf32>
    %3 = tpu.matmul %1, %2, %cst {dimension_numbers = #tpu.dot_dimension_numbers<[1], [0], [0], [1], [0, 0, 1, 1], [], []>} : vector<64x128xbf16>, vector<128x32xbf16>, vector<64x32xf32> -> vector<64x32xf32>
    %c0_3 = arith.constant 0 : index
    %c0_4 = arith.constant 0 : index
    %4 = vector.load %arg4[%c0_3, %c0_4] : memref<1x32xf32, #tpu.memory_space<vmem>>, vector<1x32xf32>
    %5 = vector.broadcast %4 : vector<1x32xf32> to vector<64x32xf32>
    %6 = arith.addf %3, %5 : vector<64x32xf32>
    %cst_5 = arith.constant 0.000000e+00 : f32
    %7 = vector.broadcast %cst_5 : f32 to vector<64x32xf32>
    %8 = arith.maximumf %6, %7 : vector<64x32xf32>
    %9 = arith.truncf %8 : vector<64x32xf32> to vector<64x32xbf16>
    %cst_6 = arith.constant 0.000000e+00 : f32
    %10 = vector.broadcast %cst_6 : f32 to vector<16x32xf32>
    %c0_7 = arith.constant 0 : index
    %c0_8 = arith.constant 0 : index
    %c0_9 = arith.constant 0 : index
    %11 = vector.load %arg2[%c0_7, %c0_8, %c0_9] : memref<9x16x64xbf16, #tpu.memory_space<vmem>>, vector<1x16x64xbf16>
    %12 = vector.shape_cast %11 : vector<1x16x64xbf16> to vector<16x64xbf16>
    %cst_10 = arith.constant dense<0.000000e+00> : vector<16x32xf32>
    %13 = tpu.matmul %12, %9, %cst_10 {dimension_numbers = #tpu.dot_dimension_numbers<[1], [0], [0], [1], [0, 0, 1, 1], [], []>} : vector<16x64xbf16>, vector<64x32xbf16>, vector<16x32xf32> -> vector<16x32xf32>
    %14 = arith.truncf %13 : vector<16x32xf32> to vector<16x32xbf16>
    %c0_11 = arith.constant 0 : index
    %c0_12 = arith.constant 0 : index
    %c0_13 = arith.constant 0 : index
    %15 = vector.load %arg5[%c0_11, %c0_12, %c0_13] : memref<9x32x32xbf16, #tpu.memory_space<vmem>>, vector<1x32x32xbf16>
    %16 = vector.shape_cast %15 : vector<1x32x32xbf16> to vector<32x32xbf16>
    %cst_14 = arith.constant dense<0.000000e+00> : vector<16x32xf32>
    %17 = tpu.matmul %14, %16, %cst_14 {dimension_numbers = #tpu.dot_dimension_numbers<[1], [0], [0], [1], [0, 0, 1, 1], [], []>} : vector<16x32xbf16>, vector<32x32xbf16>, vector<16x32xf32> -> vector<16x32xf32>
    %18 = arith.addf %10, %17 : vector<16x32xf32>
    %c1 = arith.constant 1 : index
    %c0_15 = arith.constant 0 : index
    %c0_16 = arith.constant 0 : index
    %19 = vector.load %arg2[%c1, %c0_15, %c0_16] : memref<9x16x64xbf16, #tpu.memory_space<vmem>>, vector<1x16x64xbf16>
    %20 = vector.shape_cast %19 : vector<1x16x64xbf16> to vector<16x64xbf16>
    %cst_17 = arith.constant dense<0.000000e+00> : vector<16x32xf32>
    %21 = tpu.matmul %20, %9, %cst_17 {dimension_numbers = #tpu.dot_dimension_numbers<[1], [0], [0], [1], [0, 0, 1, 1], [], []>} : vector<16x64xbf16>, vector<64x32xbf16>, vector<16x32xf32> -> vector<16x32xf32>
    %22 = arith.truncf %21 : vector<16x32xf32> to vector<16x32xbf16>
    %c1_18 = arith.constant 1 : index
    %c0_19 = arith.constant 0 : index
    %c0_20 = arith.constant 0 : index
    %23 = vector.load %arg5[%c1_18, %c0_19, %c0_20] : memref<9x32x32xbf16, #tpu.memory_space<vmem>>, vector<1x32x32xbf16>
    %24 = vector.shape_cast %23 : vector<1x32x32xbf16> to vector<32x32xbf16>
    %cst_21 = arith.constant dense<0.000000e+00> : vector<16x32xf32>
    %25 = tpu.matmul %22, %24, %cst_21 {dimension_numbers = #tpu.dot_dimension_numbers<[1], [0], [0], [1], [0, 0, 1, 1], [], []>} : vector<16x32xbf16>, vector<32x32xbf16>, vector<16x32xf32> -> vector<16x32xf32>
    %26 = arith.addf %18, %25 : vector<16x32xf32>
    %c2 = arith.constant 2 : index
    %c0_22 = arith.constant 0 : index
    %c0_23 = arith.constant 0 : index
    %27 = vector.load %arg2[%c2, %c0_22, %c0_23] : memref<9x16x64xbf16, #tpu.memory_space<vmem>>, vector<1x16x64xbf16>
    %28 = vector.shape_cast %27 : vector<1x16x64xbf16> to vector<16x64xbf16>
    %cst_24 = arith.constant dense<0.000000e+00> : vector<16x32xf32>
    %29 = tpu.matmul %28, %9, %cst_24 {dimension_numbers = #tpu.dot_dimension_numbers<[1], [0], [0], [1], [0, 0, 1, 1], [], []>} : vector<16x64xbf16>, vector<64x32xbf16>, vector<16x32xf32> -> vector<16x32xf32>
    %30 = arith.truncf %29 : vector<16x32xf32> to vector<16x32xbf16>
    %c2_25 = arith.constant 2 : index
    %c0_26 = arith.constant 0 : index
    %c0_27 = arith.constant 0 : index
    %31 = vector.load %arg5[%c2_25, %c0_26, %c0_27] : memref<9x32x32xbf16, #tpu.memory_space<vmem>>, vector<1x32x32xbf16>
    %32 = vector.shape_cast %31 : vector<1x32x32xbf16> to vector<32x32xbf16>
    %cst_28 = arith.constant dense<0.000000e+00> : vector<16x32xf32>
    %33 = tpu.matmul %30, %32, %cst_28 {dimension_numbers = #tpu.dot_dimension_numbers<[1], [0], [0], [1], [0, 0, 1, 1], [], []>} : vector<16x32xbf16>, vector<32x32xbf16>, vector<16x32xf32> -> vector<16x32xf32>
    %34 = arith.addf %26, %33 : vector<16x32xf32>
    %c3 = arith.constant 3 : index
    %c0_29 = arith.constant 0 : index
    %c0_30 = arith.constant 0 : index
    %35 = vector.load %arg2[%c3, %c0_29, %c0_30] : memref<9x16x64xbf16, #tpu.memory_space<vmem>>, vector<1x16x64xbf16>
    %36 = vector.shape_cast %35 : vector<1x16x64xbf16> to vector<16x64xbf16>
    %cst_31 = arith.constant dense<0.000000e+00> : vector<16x32xf32>
    %37 = tpu.matmul %36, %9, %cst_31 {dimension_numbers = #tpu.dot_dimension_numbers<[1], [0], [0], [1], [0, 0, 1, 1], [], []>} : vector<16x64xbf16>, vector<64x32xbf16>, vector<16x32xf32> -> vector<16x32xf32>
    %38 = arith.truncf %37 : vector<16x32xf32> to vector<16x32xbf16>
    %c3_32 = arith.constant 3 : index
    %c0_33 = arith.constant 0 : index
    %c0_34 = arith.constant 0 : index
    %39 = vector.load %arg5[%c3_32, %c0_33, %c0_34] : memref<9x32x32xbf16, #tpu.memory_space<vmem>>, vector<1x32x32xbf16>
    %40 = vector.shape_cast %39 : vector<1x32x32xbf16> to vector<32x32xbf16>
    %cst_35 = arith.constant dense<0.000000e+00> : vector<16x32xf32>
    %41 = tpu.matmul %38, %40, %cst_35 {dimension_numbers = #tpu.dot_dimension_numbers<[1], [0], [0], [1], [0, 0, 1, 1], [], []>} : vector<16x32xbf16>, vector<32x32xbf16>, vector<16x32xf32> -> vector<16x32xf32>
    %42 = arith.addf %34, %41 : vector<16x32xf32>
    %c4 = arith.constant 4 : index
    %c0_36 = arith.constant 0 : index
    %c0_37 = arith.constant 0 : index
    %43 = vector.load %arg2[%c4, %c0_36, %c0_37] : memref<9x16x64xbf16, #tpu.memory_space<vmem>>, vector<1x16x64xbf16>
    %44 = vector.shape_cast %43 : vector<1x16x64xbf16> to vector<16x64xbf16>
    %cst_38 = arith.constant dense<0.000000e+00> : vector<16x32xf32>
    %45 = tpu.matmul %44, %9, %cst_38 {dimension_numbers = #tpu.dot_dimension_numbers<[1], [0], [0], [1], [0, 0, 1, 1], [], []>} : vector<16x64xbf16>, vector<64x32xbf16>, vector<16x32xf32> -> vector<16x32xf32>
    %46 = arith.truncf %45 : vector<16x32xf32> to vector<16x32xbf16>
    %c4_39 = arith.constant 4 : index
    %c0_40 = arith.constant 0 : index
    %c0_41 = arith.constant 0 : index
    %47 = vector.load %arg5[%c4_39, %c0_40, %c0_41] : memref<9x32x32xbf16, #tpu.memory_space<vmem>>, vector<1x32x32xbf16>
    %48 = vector.shape_cast %47 : vector<1x32x32xbf16> to vector<32x32xbf16>
    %cst_42 = arith.constant dense<0.000000e+00> : vector<16x32xf32>
    %49 = tpu.matmul %46, %48, %cst_42 {dimension_numbers = #tpu.dot_dimension_numbers<[1], [0], [0], [1], [0, 0, 1, 1], [], []>} : vector<16x32xbf16>, vector<32x32xbf16>, vector<16x32xf32> -> vector<16x32xf32>
    %50 = arith.addf %42, %49 : vector<16x32xf32>
    %c5 = arith.constant 5 : index
    %c0_43 = arith.constant 0 : index
    %c0_44 = arith.constant 0 : index
    %51 = vector.load %arg2[%c5, %c0_43, %c0_44] : memref<9x16x64xbf16, #tpu.memory_space<vmem>>, vector<1x16x64xbf16>
    %52 = vector.shape_cast %51 : vector<1x16x64xbf16> to vector<16x64xbf16>
    %cst_45 = arith.constant dense<0.000000e+00> : vector<16x32xf32>
    %53 = tpu.matmul %52, %9, %cst_45 {dimension_numbers = #tpu.dot_dimension_numbers<[1], [0], [0], [1], [0, 0, 1, 1], [], []>} : vector<16x64xbf16>, vector<64x32xbf16>, vector<16x32xf32> -> vector<16x32xf32>
    %54 = arith.truncf %53 : vector<16x32xf32> to vector<16x32xbf16>
    %c5_46 = arith.constant 5 : index
    %c0_47 = arith.constant 0 : index
    %c0_48 = arith.constant 0 : index
    %55 = vector.load %arg5[%c5_46, %c0_47, %c0_48] : memref<9x32x32xbf16, #tpu.memory_space<vmem>>, vector<1x32x32xbf16>
    %56 = vector.shape_cast %55 : vector<1x32x32xbf16> to vector<32x32xbf16>
    %cst_49 = arith.constant dense<0.000000e+00> : vector<16x32xf32>
    %57 = tpu.matmul %54, %56, %cst_49 {dimension_numbers = #tpu.dot_dimension_numbers<[1], [0], [0], [1], [0, 0, 1, 1], [], []>} : vector<16x32xbf16>, vector<32x32xbf16>, vector<16x32xf32> -> vector<16x32xf32>
    %58 = arith.addf %50, %57 : vector<16x32xf32>
    %c6 = arith.constant 6 : index
    %c0_50 = arith.constant 0 : index
    %c0_51 = arith.constant 0 : index
    %59 = vector.load %arg2[%c6, %c0_50, %c0_51] : memref<9x16x64xbf16, #tpu.memory_space<vmem>>, vector<1x16x64xbf16>
    %60 = vector.shape_cast %59 : vector<1x16x64xbf16> to vector<16x64xbf16>
    %cst_52 = arith.constant dense<0.000000e+00> : vector<16x32xf32>
    %61 = tpu.matmul %60, %9, %cst_52 {dimension_numbers = #tpu.dot_dimension_numbers<[1], [0], [0], [1], [0, 0, 1, 1], [], []>} : vector<16x64xbf16>, vector<64x32xbf16>, vector<16x32xf32> -> vector<16x32xf32>
    %62 = arith.truncf %61 : vector<16x32xf32> to vector<16x32xbf16>
    %c6_53 = arith.constant 6 : index
    %c0_54 = arith.constant 0 : index
    %c0_55 = arith.constant 0 : index
    %63 = vector.load %arg5[%c6_53, %c0_54, %c0_55] : memref<9x32x32xbf16, #tpu.memory_space<vmem>>, vector<1x32x32xbf16>
    %64 = vector.shape_cast %63 : vector<1x32x32xbf16> to vector<32x32xbf16>
    %cst_56 = arith.constant dense<0.000000e+00> : vector<16x32xf32>
    %65 = tpu.matmul %62, %64, %cst_56 {dimension_numbers = #tpu.dot_dimension_numbers<[1], [0], [0], [1], [0, 0, 1, 1], [], []>} : vector<16x32xbf16>, vector<32x32xbf16>, vector<16x32xf32> -> vector<16x32xf32>
    %66 = arith.addf %58, %65 : vector<16x32xf32>
    %c7 = arith.constant 7 : index
    %c0_57 = arith.constant 0 : index
    %c0_58 = arith.constant 0 : index
    %67 = vector.load %arg2[%c7, %c0_57, %c0_58] : memref<9x16x64xbf16, #tpu.memory_space<vmem>>, vector<1x16x64xbf16>
    %68 = vector.shape_cast %67 : vector<1x16x64xbf16> to vector<16x64xbf16>
    %cst_59 = arith.constant dense<0.000000e+00> : vector<16x32xf32>
    %69 = tpu.matmul %68, %9, %cst_59 {dimension_numbers = #tpu.dot_dimension_numbers<[1], [0], [0], [1], [0, 0, 1, 1], [], []>} : vector<16x64xbf16>, vector<64x32xbf16>, vector<16x32xf32> -> vector<16x32xf32>
    %70 = arith.truncf %69 : vector<16x32xf32> to vector<16x32xbf16>
    %c7_60 = arith.constant 7 : index
    %c0_61 = arith.constant 0 : index
    %c0_62 = arith.constant 0 : index
    %71 = vector.load %arg5[%c7_60, %c0_61, %c0_62] : memref<9x32x32xbf16, #tpu.memory_space<vmem>>, vector<1x32x32xbf16>
    %72 = vector.shape_cast %71 : vector<1x32x32xbf16> to vector<32x32xbf16>
    %cst_63 = arith.constant dense<0.000000e+00> : vector<16x32xf32>
    %73 = tpu.matmul %70, %72, %cst_63 {dimension_numbers = #tpu.dot_dimension_numbers<[1], [0], [0], [1], [0, 0, 1, 1], [], []>} : vector<16x32xbf16>, vector<32x32xbf16>, vector<16x32xf32> -> vector<16x32xf32>
    %74 = arith.addf %66, %73 : vector<16x32xf32>
    %c8 = arith.constant 8 : index
    %c0_64 = arith.constant 0 : index
    %c0_65 = arith.constant 0 : index
    %75 = vector.load %arg2[%c8, %c0_64, %c0_65] : memref<9x16x64xbf16, #tpu.memory_space<vmem>>, vector<1x16x64xbf16>
    %76 = vector.shape_cast %75 : vector<1x16x64xbf16> to vector<16x64xbf16>
    %cst_66 = arith.constant dense<0.000000e+00> : vector<16x32xf32>
    %77 = tpu.matmul %76, %9, %cst_66 {dimension_numbers = #tpu.dot_dimension_numbers<[1], [0], [0], [1], [0, 0, 1, 1], [], []>} : vector<16x64xbf16>, vector<64x32xbf16>, vector<16x32xf32> -> vector<16x32xf32>
    %78 = arith.truncf %77 : vector<16x32xf32> to vector<16x32xbf16>
    %c8_67 = arith.constant 8 : index
    %c0_68 = arith.constant 0 : index
    %c0_69 = arith.constant 0 : index
    %79 = vector.load %arg5[%c8_67, %c0_68, %c0_69] : memref<9x32x32xbf16, #tpu.memory_space<vmem>>, vector<1x32x32xbf16>
    %80 = vector.shape_cast %79 : vector<1x32x32xbf16> to vector<32x32xbf16>
    %cst_70 = arith.constant dense<0.000000e+00> : vector<16x32xf32>
    %81 = tpu.matmul %78, %80, %cst_70 {dimension_numbers = #tpu.dot_dimension_numbers<[1], [0], [0], [1], [0, 0, 1, 1], [], []>} : vector<16x32xbf16>, vector<32x32xbf16>, vector<16x32xf32> -> vector<16x32xf32>
    %82 = arith.addf %74, %81 : vector<16x32xf32>
    %c0_71 = arith.constant 0 : index
    %c0_72 = arith.constant 0 : index
    %83 = vector.load %arg6[%c0_71, %c0_72] : memref<1x32xf32, #tpu.memory_space<vmem>>, vector<1x32xf32>
    %84 = vector.broadcast %83 : vector<1x32xf32> to vector<16x32xf32>
    %85 = arith.addf %82, %84 : vector<16x32xf32>
    %cst_73 = arith.constant 0.000000e+00 : f32
    %86 = vector.broadcast %cst_73 : f32 to vector<16x32xf32>
    %87 = arith.maximumf %85, %86 : vector<16x32xf32>
    %88 = arith.truncf %87 : vector<16x32xf32> to vector<16x32xbf16>
    %c0_74 = arith.constant 0 : index
    %c0_75 = arith.constant 0 : index
    %89 = vector.load %arg7[%c0_74, %c0_75] : memref<32x128xbf16, #tpu.memory_space<vmem>>, vector<32x128xbf16>
    %cst_76 = arith.constant dense<0.000000e+00> : vector<16x128xf32>
    %90 = tpu.matmul %88, %89, %cst_76 {dimension_numbers = #tpu.dot_dimension_numbers<[1], [0], [0], [1], [0, 0, 1, 1], [], []>} : vector<16x32xbf16>, vector<32x128xbf16>, vector<16x128xf32> -> vector<16x128xf32>
    %c0_77 = arith.constant 0 : index
    %c0_78 = arith.constant 0 : index
    %91 = vector.load %arg8[%c0_77, %c0_78] : memref<1x128xf32, #tpu.memory_space<vmem>>, vector<1x128xf32>
    %92 = vector.broadcast %91 : vector<1x128xf32> to vector<16x128xf32>
    %93 = arith.addf %90, %92 : vector<16x128xf32>
    %c4_79 = arith.constant 4 : index
    %c0_80 = arith.constant 0 : index
    %c0_81 = arith.constant 0 : index
    %94 = vector.load %arg2[%c4_79, %c0_80, %c0_81] : memref<9x16x64xbf16, #tpu.memory_space<vmem>>, vector<1x16x64xbf16>
    %95 = vector.shape_cast %94 : vector<1x16x64xbf16> to vector<16x64xbf16>
    %cst_82 = arith.constant dense<0.000000e+00> : vector<16x128xf32>
    %96 = tpu.matmul %95, %1, %cst_82 {dimension_numbers = #tpu.dot_dimension_numbers<[1], [0], [0], [1], [0, 0, 1, 1], [], []>} : vector<16x64xbf16>, vector<64x128xbf16>, vector<16x128xf32> -> vector<16x128xf32>
    %97 = arith.truncf %96 : vector<16x128xf32> to vector<16x128xbf16>
    %c0_83 = arith.constant 0 : index
    %c0_84 = arith.constant 0 : index
    %98 = vector.load %arg9[%c0_83, %c0_84] : memref<128x128xbf16, #tpu.memory_space<vmem>>, vector<128x128xbf16>
    %cst_85 = arith.constant dense<0.000000e+00> : vector<16x128xf32>
    %99 = tpu.matmul %97, %98, %cst_85 {dimension_numbers = #tpu.dot_dimension_numbers<[1], [0], [0], [1], [0, 0, 1, 1], [], []>} : vector<16x128xbf16>, vector<128x128xbf16>, vector<16x128xf32> -> vector<16x128xf32>
    %c0_86 = arith.constant 0 : index
    %c0_87 = arith.constant 0 : index
    %100 = vector.load %arg10[%c0_86, %c0_87] : memref<1x128xf32, #tpu.memory_space<vmem>>, vector<1x128xf32>
    %101 = vector.broadcast %100 : vector<1x128xf32> to vector<16x128xf32>
    %102 = arith.addf %99, %101 : vector<16x128xf32>
    %103 = arith.addf %93, %102 : vector<16x128xf32>
    %cst_88 = arith.constant 0.000000e+00 : f32
    %104 = vector.broadcast %cst_88 : f32 to vector<16x128xf32>
    %105 = arith.maximumf %103, %104 : vector<16x128xf32>
    %c0_89 = arith.constant 0 : index
    %c0_90 = arith.constant 0 : index
    %106 = vector.load %arg11[%c0_89, %c0_90] : memref<16x128xf32, #tpu.memory_space<vmem>>, vector<16x128xf32>
    tpu.vector_store %arg11[%c0_89, %c0_90], %105 {strides = array<i32>} : memref<16x128xf32, #tpu.memory_space<vmem>>, vector<16x128xf32>,
    return
  }
  func.func @transform_0(%arg0: i32) -> (i32, i32) {
    %c0_i32 = arith.constant 0 : i32
    %c0_i32_0 = arith.constant 0 : i32
    %c0_i32_1 = arith.constant 0 : i32
    return %c0_i32, %c0_i32_0 : i32, i32
  }
  func.func @transform_1(%arg0: i32) -> (i32, i32, i32) {
    %c0_i32 = arith.constant 0 : i32
    %c0_i32_0 = arith.constant 0 : i32
    %c0_i32_1 = arith.constant 0 : i32
    %c0_i32_2 = arith.constant 0 : i32
    return %c0_i32, %c0_i32_0, %c0_i32_1 : i32, i32, i32
  }
  func.func @transform_2(%arg0: i32) -> (i32, i32) {
    %c0_i32 = arith.constant 0 : i32
    %c0_i32_0 = arith.constant 0 : i32
    %c0_i32_1 = arith.constant 0 : i32
    return %c0_i32, %c0_i32_0 : i32, i32
  }
  func.func @transform_3(%arg0: i32) -> (i32, i32) {
    %c0_i32 = arith.constant 0 : i32
    %c0_i32_0 = arith.constant 0 : i32
    %c0_i32_1 = arith.constant 0 : i32
    return %c0_i32, %c0_i32_0 : i32, i32
  }
  func.func @transform_4(%arg0: i32) -> (i32, i32, i32) {
    %c0_i32 = arith.constant 0 : i32
    %c0_i32_0 = arith.constant 0 : i32
    %c0_i32_1 = arith.constant 0 : i32
    %c0_i32_2 = arith.constant 0 : i32
    return %c0_i32, %c0_i32_0, %c0_i32_1 : i32, i32, i32
  }
  func.func @transform_5(%arg0: i32) -> (i32, i32) {
    %c0_i32 = arith.constant 0 : i32
    %c0_i32_0 = arith.constant 0 : i32
    %c0_i32_1 = arith.constant 0 : i32
    return %c0_i32, %c0_i32_0 : i32, i32
  }
  func.func @transform_6(%arg0: i32) -> (i32, i32) {
    %c0_i32 = arith.constant 0 : i32
    %c0_i32_0 = arith.constant 0 : i32
    %c0_i32_1 = arith.constant 0 : i32
    return %c0_i32, %c0_i32_0 : i32, i32
  }
  func.func @transform_7(%arg0: i32) -> (i32, i32) {
    %c0_i32 = arith.constant 0 : i32
    %c0_i32_0 = arith.constant 0 : i32
    %c0_i32_1 = arith.constant 0 : i32
    return %c0_i32, %c0_i32_0 : i32, i32
  }
  func.func @transform_8(%arg0: i32) -> (i32, i32) {
    %c0_i32 = arith.constant 0 : i32
    %c0_i32_0 = arith.constant 0 : i32
    %c0_i32_1 = arith.constant 0 : i32
    return %c0_i32, %c0_i32_0 : i32, i32
  }
  func.func @transform_9(%arg0: i32) -> (i32, i32) {
    %c0_i32 = arith.constant 0 : i32
    %c0_i32_0 = arith.constant 0 : i32
    %c0_i32_1 = arith.constant 0 : i32
    return %c0_i32, %c0_i32_0 : i32, i32
  }
  func.func @transform_10(%arg0: i32) -> (i32, i32) {
    %c0_i32 = arith.constant 0 : i32
    %c0_i32_0 = arith.constant 0 : i32
    %c0_i32_1 = arith.constant 0 : i32
    return %c0_i32, %c0_i32_0 : i32, i32
  }
}

</mosaic_0001>

<llo_original>
// kernel: tpu_custom_call.1
$region0: #{tpu_custom_call.1}
  #allocation0 [shape = 'u32[]', space=smem, size = 0x4, offset = 0x4, fixed_abs, tag = 'smem constant byte address 0x4 - core index']
  #allocation1 [shape = 'u32[144,128]{1,0:T(1,128)}', space=vmem, size = 0x12000, scoped, tag = 'internal scratch']
  %s0 = inlined_call_operand.hbm [shape: f32[64,128], index: 0, kind: input, shape index: {}]
  %s1 = inlined_call_operand.hbm [shape: bf16[9,16,64], index: 1, kind: input, shape index: {}]
  %s2 = inlined_call_operand.hbm [shape: bf16[128,32], index: 2, kind: input, shape index: {}]
  %s3 = inlined_call_operand.hbm [shape: f32[1,32], index: 3, kind: input, shape index: {}]
  %s4 = inlined_call_operand.hbm [shape: bf16[9,32,32], index: 4, kind: input, shape index: {}]
  %s5 = inlined_call_operand.hbm [shape: f32[1,32], index: 5, kind: input, shape index: {}]
  %s6 = inlined_call_operand.hbm [shape: bf16[32,128], index: 6, kind: input, shape index: {}]
  %s7 = inlined_call_operand.hbm [shape: f32[1,128], index: 7, kind: input, shape index: {}]
  %s8 = inlined_call_operand.hbm [shape: bf16[128,128], index: 8, kind: input, shape index: {}]
  %s9 = inlined_call_operand.hbm [shape: f32[1,128], index: 9, kind: input, shape index: {}]
  %s10 = inlined_call_operand.hbm [shape: f32[16,128], index: 10, kind: output, shape index: {}]
  %s11 = sld [smem:[#allocation0]]
  $region90: #{tpu_custom_call.1} parent=0
    _
  %s13 = ssub.s32 1, %s11
  %s14 = scalar_select 0, %s13, %s11
  $region1: #{tpu_custom_call.1} parent=0
    #allocation2 [shape = 'u8[32768]{0}', space=vmem, size = 0x8000, scoped, tag = 'input window, operand 0, single buffered']
    #allocation3 [shape = 's32[1]{0}', space=sflag, size = 0x4, scoped, tag = 'scoped memory for tpu_custom_call.1']
    #allocation4 [shape = 's32[1]{0}', space=sflag, size = 0x4, scoped, tag = 'scoped memory for tpu_custom_call.1']
    #allocation5 [shape = 'u8[36864]{0}', space=vmem, size = 0x9000, scoped, tag = 'input window, operand 1, single buffered']
    #allocation6 [shape = 's32[1]{0}', space=sflag, size = 0x4, scoped, tag = 'scoped memory for tpu_custom_call.1']
    #allocation7 [shape = 'u8[32768]{0}', space=vmem, size = 0x8000, scoped, tag = 'input window, operand 2, single buffered']
    #allocation8 [shape = 'u8[512]{0}', space=vmem, size = 0x400, scoped, tag = 'input window, operand 3, single buffered']
    #allocation9 [shape = 's32[1]{0}', space=sflag, size = 0x4, scoped, tag = 'scoped memory for tpu_custom_call.1']
    #allocation10 [shape = 'u8[73728]{0}', space=vmem, size = 0x12000, scoped, tag = 'input window, operand 4, single buffered']
    #allocation11 [shape = 'u8[512]{0}', space=vmem, size = 0x400, scoped, tag = 'input window, operand 5, single buffered']
    #allocation12 [shape = 's32[1]{0}', space=sflag, size = 0x4, scoped, tag = 'scoped memory for tpu_custom_call.1']
    #allocation13 [shape = 'u8[8192]{0}', space=vmem, size = 0x2000, scoped, tag = 'input window, operand 6, single buffered']
    #allocation14 [shape = 'u8[512]{0}', space=vmem, size = 0x400, scoped, tag = 'input window, operand 7, single buffered']
    #allocation15 [shape = 's32[1]{0}', space=sflag, size = 0x4, scoped, tag = 'scoped memory for tpu_custom_call.1']
    #allocation16 [shape = 'u8[32768]{0}', space=vmem, size = 0x8000, scoped, tag = 'input window, operand 8, single buffered']
    #allocation17 [shape = 'u8[512]{0}', space=vmem, size = 0x400, scoped, tag = 'input window, operand 9, single buffered']
    #allocation18 [shape = 's32[1]{0}', space=sflag, size = 0x4, scoped, tag = 'scoped memory for tpu_custom_call.1']
    #allocation19 [shape = 'u8[8192]{0}', space=vmem, size = 0x2000, scoped, tag = 'output window, operand 0, single buffered']
    %15 = vsyncpa [#allocation3], 0
    %16 = vsyncpa [#allocation6], 0
    %17 = vsyncpa [#allocation9], 0
    %18 = vsyncpa [#allocation12], 0
    %19 = vsyncpa [#allocation15], 0
    %20 = vsyncpa [#allocation18], 0
    %21 = vsyncpa [#allocation4], 0
    // Predicated region
    $region2: #{tpu_custom_call.1} parent=1 // pred_check
      _
    $region3: #{tpu_custom_call.1} parent=1 // pred_check_branch
      %23 = sbr.rel (0) target = $region5
    $region4: #{tpu_custom_call.1} parent=1 // pred_region
      %s25 = ssub.s32 1024, 1024
      %26 = vsyncadd [#allocation3], %s25
      %s27 = sshll.u32 [#allocation2], 4
      %s28 = int_to_ptr.vmem [resolvable:$true] %s27
      %33 = dma.hbm_to_vmem [thread:$0]  %s0, 1024, %s28, [#allocation3], 128, 128, 8
    $region5: #{tpu_custom_call.1} parent=1 // pred_fallthru
      _
    // Predicated region
    $region6: #{tpu_custom_call.1} parent=1 // pred_check
      _
    $region7: #{tpu_custom_call.1} parent=1 // pred_check_branch
      %35 = sbr.rel (0) target = $region9
    $region8: #{tpu_custom_call.1} parent=1 // pred_region
      %s37 = ssub.s32 1152, 1152
      %38 = vsyncadd [#allocation6], %s37
      %s39 = sshll.u32 [#allocation5], 4
      %s40 = int_to_ptr.vmem [resolvable:$true] %s39
      %45 = dma.hbm_to_vmem [thread:$0]  %s1, 1152, %s40, [#allocation6], 64, 64, 4
    $region9: #{tpu_custom_call.1} parent=1 // pred_fallthru
      _
    // Predicated region
    $region10: #{tpu_custom_call.1} parent=1 // pred_check
      _
    $region11: #{tpu_custom_call.1} parent=1 // pred_check_branch
      %47 = sbr.rel (0) target = $region13
    $region12: #{tpu_custom_call.1} parent=1 // pred_region
      %s49 = ssub.s32 1024, 1024
      %50 = vsyncadd [#allocation6], %s49
      %s51 = sshll.u32 [#allocation7], 4
      %s52 = int_to_ptr.vmem [resolvable:$true] %s51
      %57 = dma.hbm_to_vmem [thread:$0]  %s2, 1024, %s52, [#allocation6], 64, 64, 4
    $region13: #{tpu_custom_call.1} parent=1 // pred_fallthru
      _
    // Predicated region
    $region14: #{tpu_custom_call.1} parent=1 // pred_check
      _
    $region15: #{tpu_custom_call.1} parent=1 // pred_check_branch
      %59 = sbr.rel (0) target = $region17
    $region16: #{tpu_custom_call.1} parent=1 // pred_region
      %s61 = ssub.s32 16, 16
      %62 = vsyncadd [#allocation9], %s61
      %s64 = sshll.u32 [#allocation8], 4
      %s65 = int_to_ptr.vmem [resolvable:$true] %s64
      %67 = dma.hbm_to_vmem [thread:$0]  %s3, 16, %s65, [#allocation9]
    $region17: #{tpu_custom_call.1} parent=1 // pred_fallthru
      _
    // Predicated region
    $region18: #{tpu_custom_call.1} parent=1 // pred_check
      _
    $region19: #{tpu_custom_call.1} parent=1 // pred_check_branch
      %69 = sbr.rel (0) target = $region21
    $region20: #{tpu_custom_call.1} parent=1 // pred_region
      %s71 = ssub.s32 2304, 2304
      %72 = vsyncadd [#allocation9], %s71
      %s73 = sshll.u32 [#allocation10], 4
      %s74 = int_to_ptr.vmem [resolvable:$true] %s73
      %79 = dma.hbm_to_vmem [thread:$0]  %s4, 2304, %s74, [#allocation9], 64, 64, 4
    $region21: #{tpu_custom_call.1} parent=1 // pred_fallthru
      _
    // Predicated region
    $region22: #{tpu_custom_call.1} parent=1 // pred_check
      _
    $region23: #{tpu_custom_call.1} parent=1 // pred_check_branch
      %81 = sbr.rel (0) target = $region25
    $region24: #{tpu_custom_call.1} parent=1 // pred_region
      %s83 = ssub.s32 16, 16
      %84 = vsyncadd [#allocation12], %s83
      %s86 = sshll.u32 [#allocation11], 4
      %s87 = int_to_ptr.vmem [resolvable:$true] %s86
      %89 = dma.hbm_to_vmem [thread:$0]  %s5, 16, %s87, [#allocation12]
    $region25: #{tpu_custom_call.1} parent=1 // pred_fallthru
      _
    // Predicated region
    $region26: #{tpu_custom_call.1} parent=1 // pred_check
      _
    $region27: #{tpu_custom_call.1} parent=1 // pred_check_branch
      %91 = sbr.rel (0) target = $region29
    $region28: #{tpu_custom_call.1} parent=1 // pred_region
      %s93 = ssub.s32 256, 256
      %94 = vsyncadd [#allocation12], %s93
      %s95 = sshll.u32 [#allocation13], 4
      %s96 = int_to_ptr.vmem [resolvable:$true] %s95
      %101 = dma.hbm_to_vmem [thread:$0]  %s6, 256, %s96, [#allocation12], 64, 64, 4
    $region29: #{tpu_custom_call.1} parent=1 // pred_fallthru
      _
    // Predicated region
    $region30: #{tpu_custom_call.1} parent=1 // pred_check
      _
    $region31: #{tpu_custom_call.1} parent=1 // pred_check_branch
      %103 = sbr.rel (0) target = $region33
    $region32: #{tpu_custom_call.1} parent=1 // pred_region
      %s105 = ssub.s32 16, 16
      %106 = vsyncadd [#allocation15], %s105
      %s108 = sshll.u32 [#allocation14], 4
      %s109 = int_to_ptr.vmem [resolvable:$true] %s108
      %111 = dma.hbm_to_vmem [thread:$0]  %s7, 16, %s109, [#allocation15]
    $region33: #{tpu_custom_call.1} parent=1 // pred_fallthru
      _
    // Predicated region
    $region34: #{tpu_custom_call.1} parent=1 // pred_check
      _
    $region35: #{tpu_custom_call.1} parent=1 // pred_check_branch
      %113 = sbr.rel (0) target = $region37
    $region36: #{tpu_custom_call.1} parent=1 // pred_region
      %s115 = ssub.s32 1024, 1024
      %116 = vsyncadd [#allocation15], %s115
      %s117 = sshll.u32 [#allocation16], 4
      %s118 = int_to_ptr.vmem [resolvable:$true] %s117
      %123 = dma.hbm_to_vmem [thread:$0]  %s8, 1024, %s118, [#allocation15], 64, 64, 4
    $region37: #{tpu_custom_call.1} parent=1 // pred_fallthru
      _
    // Predicated region
    $region38: #{tpu_custom_call.1} parent=1 // pred_check
      _
    $region39: #{tpu_custom_call.1} parent=1 // pred_check_branch
      %125 = sbr.rel (0) target = $region41
    $region40: #{tpu_custom_call.1} parent=1 // pred_region
      %s127 = ssub.s32 16, 16
      %128 = vsyncadd [#allocation18], %s127
      %s130 = sshll.u32 [#allocation17], 4
      %s131 = int_to_ptr.vmem [resolvable:$true] %s130
      %133 = dma.hbm_to_vmem [thread:$0]  %s9, 16, %s131, [#allocation18]
    $region41: #{tpu_custom_call.1} parent=1 // pred_fallthru
      _
    // Predicated region
    $region42: #{tpu_custom_call.1} parent=1 // pred_check
      _
    $region43: #{tpu_custom_call.1} parent=1 // pred_check_branch
      %135 = sbr.rel (0) target = $region45
    $region44: #{tpu_custom_call.1} parent=1 // pred_region
      %136 = dma.done [#allocation3], 1024
    $region45: #{tpu_custom_call.1} parent=1 // pred_fallthru
      _
    // Predicated region
    $region46: #{tpu_custom_call.1} parent=1 // pred_check
      _
    $region47: #{tpu_custom_call.1} parent=1 // pred_check_branch
      %138 = sbr.rel (0) target = $region49
    $region48: #{tpu_custom_call.1} parent=1 // pred_region
      %139 = dma.done [#allocation6], 1152
    $region49: #{tpu_custom_call.1} parent=1 // pred_fallthru
      _
    // Predicated region
    $region50: #{tpu_custom_call.1} parent=1 // pred_check
      _
    $region51: #{tpu_custom_call.1} parent=1 // pred_check_branch
      %141 = sbr.rel (0) target = $region53
    $region52: #{tpu_custom_call.1} parent=1 // pred_region
      %142 = dma.done [#allocation6], 1024
    $region53: #{tpu_custom_call.1} parent=1 // pred_fallthru
      _
    // Predicated region
    $region54: #{tpu_custom_call.1} parent=1 // pred_check
      _
    $region55: #{tpu_custom_call.1} parent=1 // pred_check_branch
      %144 = sbr.rel (0) target = $region57
    $region56: #{tpu_custom_call.1} parent=1 // pred_region
      %145 = dma.done [#allocation9], 16
    $region57: #{tpu_custom_call.1} parent=1 // pred_fallthru
      _
    // Predicated region
    $region58: #{tpu_custom_call.1} parent=1 // pred_check
      _
    $region59: #{tpu_custom_call.1} parent=1 // pred_check_branch
      %147 = sbr.rel (0) target = $region61
    $region60: #{tpu_custom_call.1} parent=1 // pred_region
      %148 = dma.done [#allocation9], 2304
    $region61: #{tpu_custom_call.1} parent=1 // pred_fallthru
      _
    // Predicated region
    $region62: #{tpu_custom_call.1} parent=1 // pred_check
      _
    $region63: #{tpu_custom_call.1} parent=1 // pred_check_branch
      %150 = sbr.rel (0) target = $region65
    $region64: #{tpu_custom_call.1} parent=1 // pred_region
      %151 = dma.done [#allocation12], 16
    $region65: #{tpu_custom_call.1} parent=1 // pred_fallthru
      _
    // Predicated region
    $region66: #{tpu_custom_call.1} parent=1 // pred_check
      _
    $region67: #{tpu_custom_call.1} parent=1 // pred_check_branch
      %153 = sbr.rel (0) target = $region69
    $region68: #{tpu_custom_call.1} parent=1 // pred_region
      %154 = dma.done [#allocation12], 256
    $region69: #{tpu_custom_call.1} parent=1 // pred_fallthru
      _
    // Predicated region
    $region70: #{tpu_custom_call.1} parent=1 // pred_check
      _
    $region71: #{tpu_custom_call.1} parent=1 // pred_check_branch
      %156 = sbr.rel (0) target = $region73
    $region72: #{tpu_custom_call.1} parent=1 // pred_region
      %157 = dma.done [#allocation15], 16
    $region73: #{tpu_custom_call.1} parent=1 // pred_fallthru
      _
    // Predicated region
    $region74: #{tpu_custom_call.1} parent=1 // pred_check
      _
    $region75: #{tpu_custom_call.1} parent=1 // pred_check_branch
      %159 = sbr.rel (0) target = $region77
    $region76: #{tpu_custom_call.1} parent=1 // pred_region
      %160 = dma.done [#allocation15], 1024
    $region77: #{tpu_custom_call.1} parent=1 // pred_fallthru
      _
    // Predicated region
    $region78: #{tpu_custom_call.1} parent=1 // pred_check
      _
    $region79: #{tpu_custom_call.1} parent=1 // pred_check_branch
      %162 = sbr.rel (0) target = $region81
    $region80: #{tpu_custom_call.1} parent=1 // pred_region
      %163 = dma.done [#allocation18], 16
    $region81: #{tpu_custom_call.1} parent=1 // pred_fallthru
      _
    %v165 = vld [vmem:[#allocation2] sm:$0xff]
    %v166 = vld [vmem:[#allocation2 + $0x8] sm:$0xff]
    %v167 = vld [vmem:[#allocation2 + $0x10] sm:$0xff]
    %v168 = vld [vmem:[#allocation2 + $0x18] sm:$0xff]
    %v169 = vld [vmem:[#allocation2 + $0x20] sm:$0xff]
    %v170 = vld [vmem:[#allocation2 + $0x28] sm:$0xff]
    %v171 = vld [vmem:[#allocation2 + $0x30] sm:$0xff]
    %v172 = vld [vmem:[#allocation2 + $0x38] sm:$0xff]
    %v173 = vpack.c.bf16 %v166, %v165
    %v174 = vpack.c.bf16 %v168, %v167
    %v175 = vpack.c.bf16 %v170, %v169
    %v176 = vpack.c.bf16 %v172, %v171
    %v177 = vld [vmem:[#allocation7] sm:$0xf]
    %v178 = vld [vmem:[#allocation7 + $0x4] sm:$0xf]
    %v179 = vld [vmem:[#allocation7 + $0x8] sm:$0xf]
    %v180 = vld [vmem:[#allocation7 + $0xc] sm:$0xf]
    %v181 = vld [vmem:[#allocation7 + $0x10] sm:$0xf]
    %v182 = vld [vmem:[#allocation7 + $0x14] sm:$0xf]
    %v183 = vld [vmem:[#allocation7 + $0x18] sm:$0xf]
    %v184 = vld [vmem:[#allocation7 + $0x1c] sm:$0xf]
    %v185 = vld [vmem:[#allocation7 + $0x20] sm:$0xf]
    %v186 = vld [vmem:[#allocation7 + $0x24] sm:$0xf]
    %v187 = vld [vmem:[#allocation7 + $0x28] sm:$0xf]
    %v188 = vld [vmem:[#allocation7 + $0x2c] sm:$0xf]
    %v189 = vld [vmem:[#allocation7 + $0x30] sm:$0xf]
    %v190 = vld [vmem:[#allocation7 + $0x34] sm:$0xf]
    %v191 = vld [vmem:[#allocation7 + $0x38] sm:$0xf]
    %v192 = vld [vmem:[#allocation7 + $0x3c] sm:$0xf]
    %v193 = vld [vmem:[#allocation8] sm:$0x1]
    %v195 = vlaneseq
    %v196 = vshrl.u32 %v195, 7
    %v197 = vsub.s32 0, %v196
    %v198 = vrot.slane %v193, %v197
    %v216 = vunpack.c.l.b16 %v177
    %v217 = vunpack.c.l.b16 %v178
    %v218 = vunpack.c.l.b16 %v179
    %v219 = vunpack.c.l.b16 %v180
    %v220 = vunpack.c.l.b16 %v181
    %v221 = vunpack.c.l.b16 %v182
    %v222 = vunpack.c.l.b16 %v183
    %v223 = vunpack.c.l.b16 %v184
    %v224 = vunpack.c.l.b16 %v185
    %v225 = vunpack.c.l.b16 %v186
    %v226 = vunpack.c.l.b16 %v187
    %v227 = vunpack.c.l.b16 %v188
    %v228 = vunpack.c.l.b16 %v189
    %v229 = vunpack.c.l.b16 %v190
    %v230 = vunpack.c.l.b16 %v191
    %v231 = vunpack.c.l.b16 %v192
    %v232 = vpack.c.b16 %v217, %v216
    %v233 = vpack.c.b16 %v219, %v218
    %v234 = vpack.c.b16 %v221, %v220
    %v235 = vpack.c.b16 %v223, %v222
    %v236 = vpack.c.b16 %v225, %v224
    %v237 = vpack.c.b16 %v227, %v226
    %v238 = vpack.c.b16 %v229, %v228
    %v239 = vpack.c.b16 %v231, %v230
    %248 = vmatprep.subr.bf16.mxu0 0
    %249 = vmatpush1.bf16.msra.mxu0 %v232
    %250 = vmatprep.subr.bf16.mxu0 0
    %251 = vmatpush1.bf16.msra.mxu0 %v233
    %252 = vmatprep.subr.bf16.mxu0 0
    %253 = vmatpush1.bf16.msra.mxu0 %v234
    %254 = vmatprep.subr.bf16.mxu0 0
    %255 = vmatpush1.bf16.msra.mxu0 %v235
    %256 = vmatprep.subr.bf16.mxu0 0
    %257 = vmatpush1.bf16.msra.mxu0 %v236
    %258 = vmatprep.subr.bf16.mxu0 0
    %259 = vmatpush1.bf16.msra.mxu0 %v237
    %260 = vmatprep.subr.bf16.mxu0 0
    %261 = vmatpush1.bf16.msra.mxu0 %v238
    %262 = vmatprep.subr.bf16.mxu0 0
    %263 = vmatpush1.bf16.msra.mxu0 %v239
    %264 = vmatprep.subr.bf16.mxu0 0
    %265 = vmatpush1.bf16.msra.mxu0 0
    %266 = vmatprep.subr.bf16.mxu0 0
    %267 = vmatpush1.bf16.msra.mxu0 0
    %268 = vmatprep.subr.bf16.mxu0 0
    %269 = vmatpush1.bf16.msra.mxu0 0
    %270 = vmatprep.subr.bf16.mxu0 0
    %271 = vmatpush1.bf16.msra.mxu0 0
    %272 = vmatprep.subr.bf16.mxu0 0
    %273 = vmatpush1.bf16.msra.mxu0 0
    %274 = vmatprep.subr.bf16.mxu0 0
    %275 = vmatpush1.bf16.msra.mxu0 0
    %276 = vmatprep.subr.bf16.mxu0 0
    %277 = vmatpush1.bf16.msra.mxu0 0
    %278 = vmatprep.subr.bf16.mxu0 0
    %279 = vmatpush1.bf16.msra.mxu0 0
    %280 = vmatprep.mubr.bf16.mxu0 0
    %281 = vmatmul.mubr.bf16.gmra.mrb[0].mxu0 %v173
    %v282 = vpop.f32.mrb[0].mxu0
    %v283 = vadd.f32 %v198, %v282
    %v284 = vpop.f32.mrb[0].mxu0
    %v285 = vpop.f32.mrb[0].mxu0
    %v286 = vadd.f32 %v198, %v285
    %v287 = vpop.f32.mrb[0].mxu0
    %288 = vmatprep.mubr.bf16.mxu0 0
    %289 = vmatmul.mubr.bf16.gmra.mrb[0].mxu0 %v174
    %v290 = vpop.f32.mrb[0].mxu0
    %v291 = vadd.f32 %v198, %v290
    %v292 = vpop.f32.mrb[0].mxu0
    %v293 = vpop.f32.mrb[0].mxu0
    %v294 = vadd.f32 %v198, %v293
    %v295 = vpop.f32.mrb[0].mxu0
    %296 = vmatprep.mubr.bf16.mxu0 0
    %297 = vmatmul.mubr.bf16.gmra.mrb[0].mxu0 %v175
    %v298 = vpop.f32.mrb[0].mxu0
    %v299 = vadd.f32 %v198, %v298
    %v300 = vpop.f32.mrb[0].mxu0
    %v301 = vpop.f32.mrb[0].mxu0
    %v302 = vadd.f32 %v198, %v301
    %v303 = vpop.f32.mrb[0].mxu0
    %304 = vmatprep.mubr.bf16.mxu0 0
    %305 = vmatmul.mubr.bf16.gmra.mrb[0].mxu0 %v176
    %v306 = vpop.f32.mrb[0].mxu0
    %v307 = vadd.f32 %v198, %v306
    %v308 = vpop.f32.mrb[0].mxu0
    %v309 = vpop.f32.mrb[0].mxu0
    %v310 = vadd.f32 %v198, %v309
    %v311 = vpop.f32.mrb[0].mxu0
    %312 = vdwg.mxu0
    %v313 = vmax.f32 %v283, 0.0
    %v314 = vmax.f32 %v286, 0.0
    %v315 = vmax.f32 %v291, 0.0
    %v316 = vmax.f32 %v294, 0.0
    %v317 = vmax.f32 %v299, 0.0
    %v318 = vmax.f32 %v302, 0.0
    %v319 = vmax.f32 %v307, 0.0
    %v320 = vmax.f32 %v310, 0.0
    %v321 = vpack.c.bf16 %v314, %v313
    %v322 = vpack.c.bf16 %v316, %v315
    %v323 = vpack.c.bf16 %v318, %v317
    %v324 = vpack.c.bf16 %v320, %v319
    %v325 = vld [vmem:[#allocation5] sm:$0xf]
    %v326 = vld [vmem:[#allocation5 + $0x4] sm:$0xf]
    %v329 = vunpack.c.l.b16 %v325
    %v330 = vunpack.c.l.b16 %v326
    %v331 = vpack.c.b16 %v330, %v329
    %vm332 = vcmask 523264
    %v334 = vsel %vm332, %v331, 0
    %336 = vmatprep.subr.bf16.mxu0 0
    %337 = vmatpush1.bf16.msra.mxu0 %v321
    %338 = vmatprep.subr.bf16.mxu0 0
    %339 = vmatpush1.bf16.msra.mxu0 %v322
    %340 = vmatprep.subr.bf16.mxu0 0
    %341 = vmatpush1.bf16.msra.mxu0 %v323
    %342 = vmatprep.subr.bf16.mxu0 0
    %343 = vmatpush1.bf16.msra.mxu0 %v324
    %344 = vmatprep.subr.bf16.mxu0 0
    %345 = vmatpush1.bf16.msra.mxu0 0
    %346 = vmatprep.subr.bf16.mxu0 0
    %347 = vmatpush1.bf16.msra.mxu0 0
    %348 = vmatprep.subr.bf16.mxu0 0
    %349 = vmatpush1.bf16.msra.mxu0 0
    %350 = vmatprep.subr.bf16.mxu0 0
    %351 = vmatpush1.bf16.msra.mxu0 0
    %352 = vmatprep.subr.bf16.mxu0 0
    %353 = vmatpush1.bf16.msra.mxu0 0
    %354 = vmatprep.subr.bf16.mxu0 0
    %355 = vmatpush1.bf16.msra.mxu0 0
    %356 = vmatprep.subr.bf16.mxu0 0
    %357 = vmatpush1.bf16.msra.mxu0 0
    %358 = vmatprep.subr.bf16.mxu0 0
    %359 = vmatpush1.bf16.msra.mxu0 0
    %360 = vmatprep.subr.bf16.mxu0 0
    %361 = vmatpush1.bf16.msra.mxu0 0
    %362 = vmatprep.subr.bf16.mxu0 0
    %363 = vmatpush1.bf16.msra.mxu0 0
    %364 = vmatprep.subr.bf16.mxu0 0
    %365 = vmatpush1.bf16.msra.mxu0 0
    %366 = vmatprep.subr.bf16.mxu0 0
    %367 = vmatpush1.bf16.msra.mxu0 0
    %368 = vmatprep.mubr.bf16.mxu0 0
    %369 = vmatmul.mubr.bf16.gmra.mrb[0].mxu0 %v334
    %v370 = vpop.f32.mrb[0].mxu0
    %v371 = vadd.f32 0.0, %v370
    %v372 = vpop.f32.mrb[0].mxu0
    %v373 = vpop.f32.mrb[0].mxu0
    %v374 = vadd.f32 0.0, %v373
    %v375 = vpop.f32.mrb[0].mxu0
    %376 = vdwg.mxu0
    %v377 = vpack.c.bf16 %v374, %v371
    %v378 = vld [vmem:[#allocation10] sm:$0xf]
    %v379 = vld [vmem:[#allocation10 + $0x4] sm:$0xf]
    %v380 = vld [vmem:[#allocation10 + $0x8] sm:$0xf]
    %v381 = vld [vmem:[#allocation10 + $0xc] sm:$0xf]
    %s382 = scalar_lea.vmem [#allocation5], 8
    %v383 = vld [vmem:[%s382] sm:$0xf]
    %v384 = vld [vmem:[%s382 + $0x4] sm:$0xf]
    %v387 = vunpack.c.l.b16 %v383
    %v388 = vunpack.c.l.b16 %v384
    %v389 = vpack.c.b16 %v388, %v387
    %v391 = vsel %vm332, %v389, 0
    %393 = vmatprep.subr.bf16.mxu0 0
    %394 = vmatpush1.bf16.msra.mxu0 %v321
    %395 = vmatprep.subr.bf16.mxu0 0
    %396 = vmatpush1.bf16.msra.mxu0 %v322
    %397 = vmatprep.subr.bf16.mxu0 0
    %398 = vmatpush1.bf16.msra.mxu0 %v323
    %399 = vmatprep.subr.bf16.mxu0 0
    %400 = vmatpush1.bf16.msra.mxu0 %v324
    %401 = vmatprep.subr.bf16.mxu0 0
    %402 = vmatpush1.bf16.msra.mxu0 0
    %403 = vmatprep.subr.bf16.mxu0 0
    %404 = vmatpush1.bf16.msra.mxu0 0
    %405 = vmatprep.subr.bf16.mxu0 0
    %406 = vmatpush1.bf16.msra.mxu0 0
    %407 = vmatprep.subr.bf16.mxu0 0
    %408 = vmatpush1.bf16.msra.mxu0 0
    %409 = vmatprep.subr.bf16.mxu0 0
    %410 = vmatpush1.bf16.msra.mxu0 0
    %411 = vmatprep.subr.bf16.mxu0 0
    %412 = vmatpush1.bf16.msra.mxu0 0
    %413 = vmatprep.subr.bf16.mxu0 0
    %414 = vmatpush1.bf16.msra.mxu0 0
    %415 = vmatprep.subr.bf16.mxu0 0
    %416 = vmatpush1.bf16.msra.mxu0 0
    %417 = vmatprep.subr.bf16.mxu0 0
    %418 = vmatpush1.bf16.msra.mxu0 0
    %419 = vmatprep.subr.bf16.mxu0 0
    %420 = vmatpush1.bf16.msra.mxu0 0
    %421 = vmatprep.subr.bf16.mxu0 0
    %422 = vmatpush1.bf16.msra.mxu0 0
    %423 = vmatprep.subr.bf16.mxu0 0
    %424 = vmatpush1.bf16.msra.mxu0 0
    %425 = vmatprep.mubr.bf16.mxu0 0
    %426 = vmatmul.mubr.bf16.gmra.mrb[0].mxu0 %v391
    %v427 = vpop.f32.mrb[0].mxu0
    %v428 = vadd.f32 0.0, %v427
    %v429 = vpop.f32.mrb[0].mxu0
    %v430 = vpop.f32.mrb[0].mxu0
    %v431 = vadd.f32 0.0, %v430
    %v432 = vpop.f32.mrb[0].mxu0
    %433 = vdwg.mxu0
    %v434 = vpack.c.bf16 %v431, %v428
    %s435 = scalar_lea.vmem [#allocation10], 16
    %v436 = vld [vmem:[%s435] sm:$0xf]
    %v437 = vld [vmem:[%s435 + $0x4] sm:$0xf]
    %v438 = vld [vmem:[%s435 + $0x8] sm:$0xf]
    %v439 = vld [vmem:[%s435 + $0xc] sm:$0xf]
    %v444 = vunpack.c.l.b16 %v436
    %v445 = vunpack.c.l.b16 %v437
    %v446 = vunpack.c.l.b16 %v438
    %v447 = vunpack.c.l.b16 %v439
    %v448 = vpack.c.b16 %v445, %v444
    %v449 = vpack.c.b16 %v447, %v446
    %vm452 = vcmask 261120
    %v454 = vsel %vm452, %v434, 0
    %456 = vmatprep.subr.bf16.mxu0 0
    %457 = vmatpush1.bf16.msra.mxu0 %v448
    %458 = vmatprep.subr.bf16.mxu0 0
    %459 = vmatpush1.bf16.msra.mxu0 %v449
    %460 = vmatprep.subr.bf16.mxu0 0
    %461 = vmatpush1.bf16.msra.mxu0 0
    %462 = vmatprep.subr.bf16.mxu0 0
    %463 = vmatpush1.bf16.msra.mxu0 0
    %464 = vmatprep.subr.bf16.mxu0 0
    %465 = vmatpush1.bf16.msra.mxu0 0
    %466 = vmatprep.subr.bf16.mxu0 0
    %467 = vmatpush1.bf16.msra.mxu0 0
    %468 = vmatprep.subr.bf16.mxu0 0
    %469 = vmatpush1.bf16.msra.mxu0 0
    %470 = vmatprep.subr.bf16.mxu0 0
    %471 = vmatpush1.bf16.msra.mxu0 0
    %472 = vmatprep.subr.bf16.mxu0 0
    %473 = vmatpush1.bf16.msra.mxu0 0
    %474 = vmatprep.subr.bf16.mxu0 0
    %475 = vmatpush1.bf16.msra.mxu0 0
    %476 = vmatprep.subr.bf16.mxu0 0
    %477 = vmatpush1.bf16.msra.mxu0 0
    %478 = vmatprep.subr.bf16.mxu0 0
    %479 = vmatpush1.bf16.msra.mxu0 0
    %480 = vmatprep.subr.bf16.mxu0 0
    %481 = vmatpush1.bf16.msra.mxu0 0
    %482 = vmatprep.subr.bf16.mxu0 0
    %483 = vmatpush1.bf16.msra.mxu0 0
    %484 = vmatprep.subr.bf16.mxu0 0
    %485 = vmatpush1.bf16.msra.mxu0 0
    %486 = vmatprep.subr.bf16.mxu0 0
    %487 = vmatpush1.bf16.msra.mxu0 0
    %488 = vmatprep.mubr.bf16.mxu0 0
    %489 = vmatmul.mubr.bf16.gmra.mrb[0].mxu0 %v454
    %v490 = vpop.f32.mrb[0].mxu0
    %v491 = vadd.f32 0.0, %v490
    %v492 = vpop.f32.mrb[0].mxu0
    %v493 = vpop.f32.mrb[0].mxu0
    %v494 = vadd.f32 0.0, %v493
    %v495 = vpop.f32.mrb[0].mxu0
    %496 = vdwg.mxu0
    %v501 = vunpack.c.l.b16 %v378
    %v502 = vunpack.c.l.b16 %v379
    %v503 = vunpack.c.l.b16 %v380
    %v504 = vunpack.c.l.b16 %v381
    %v505 = vpack.c.b16 %v502, %v501
    %v506 = vpack.c.b16 %v504, %v503
    %v510 = vsel %vm452, %v377, 0
    %512 = vmatprep.subr.bf16.mxu0 0
    %513 = vmatpush1.bf16.msra.mxu0 %v505
    %514 = vmatprep.subr.bf16.mxu0 0
    %515 = vmatpush1.bf16.msra.mxu0 %v506
    %516 = vmatprep.subr.bf16.mxu0 0
    %517 = vmatpush1.bf16.msra.mxu0 0
    %518 = vmatprep.subr.bf16.mxu0 0
    %519 = vmatpush1.bf16.msra.mxu0 0
    %520 = vmatprep.subr.bf16.mxu0 0
    %521 = vmatpush1.bf16.msra.mxu0 0
    %522 = vmatprep.subr.bf16.mxu0 0
    %523 = vmatpush1.bf16.msra.mxu0 0
    %524 = vmatprep.subr.bf16.mxu0 0
    %525 = vmatpush1.bf16.msra.mxu0 0
    %526 = vmatprep.subr.bf16.mxu0 0
    %527 = vmatpush1.bf16.msra.mxu0 0
    %528 = vmatprep.subr.bf16.mxu0 0
    %529 = vmatpush1.bf16.msra.mxu0 0
    %530 = vmatprep.subr.bf16.mxu0 0
    %531 = vmatpush1.bf16.msra.mxu0 0
    %532 = vmatprep.subr.bf16.mxu0 0
    %533 = vmatpush1.bf16.msra.mxu0 0
    %534 = vmatprep.subr.bf16.mxu0 0
    %535 = vmatpush1.bf16.msra.mxu0 0
    %536 = vmatprep.subr.bf16.mxu0 0
    %537 = vmatpush1.bf16.msra.mxu0 0
    %538 = vmatprep.subr.bf16.mxu0 0
    %539 = vmatpush1.bf16.msra.mxu0 0
    %540 = vmatprep.subr.bf16.mxu0 0
    %541 = vmatpush1.bf16.msra.mxu0 0
    %542 = vmatprep.subr.bf16.mxu0 0
    %543 = vmatpush1.bf16.msra.mxu0 0
    %544 = vmatprep.mubr.bf16.mxu0 0
    %545 = vmatmul.mubr.bf16.gmra.mrb[0].mxu0 %v510
    %v546 = vpop.f32.mrb[0].mxu0
    %v547 = vadd.f32 %v491, %v546
    %v548 = vpop.f32.mrb[0].mxu0
    %v549 = vpop.f32.mrb[0].mxu0
    %v550 = vadd.f32 %v494, %v549
    %v551 = vpop.f32.mrb[0].mxu0
    %552 = vdwg.mxu0
    %s553 = scalar_lea.vmem [#allocation5], 16
    %v554 = vld [vmem:[%s553] sm:$0xf]
    %v555 = vld [vmem:[%s553 + $0x4] sm:$0xf]
    %v558 = vunpack.c.l.b16 %v554
    %v559 = vunpack.c.l.b16 %v555
    %v560 = vpack.c.b16 %v559, %v558
    %v562 = vsel %vm332, %v560, 0
    %564 = vmatprep.subr.bf16.mxu0 0
    %565 = vmatpush1.bf16.msra.mxu0 %v321
    %566 = vmatprep.subr.bf16.mxu0 0
    %567 = vmatpush1.bf16.msra.mxu0 %v322
    %568 = vmatprep.subr.bf16.mxu0 0
    %569 = vmatpush1.bf16.msra.mxu0 %v323
    %570 = vmatprep.subr.bf16.mxu0 0
    %571 = vmatpush1.bf16.msra.mxu0 %v324
    %572 = vmatprep.subr.bf16.mxu0 0
    %573 = vmatpush1.bf16.msra.mxu0 0
    %574 = vmatprep.subr.bf16.mxu0 0
    %575 = vmatpush1.bf16.msra.mxu0 0
    %576 = vmatprep.subr.bf16.mxu0 0
    %577 = vmatpush1.bf16.msra.mxu0 0
    %578 = vmatprep.subr.bf16.mxu0 0
    %579 = vmatpush1.bf16.msra.mxu0 0
    %580 = vmatprep.subr.bf16.mxu0 0
    %581 = vmatpush1.bf16.msra.mxu0 0
    %582 = vmatprep.subr.bf16.mxu0 0
    %583 = vmatpush1.bf16.msra.mxu0 0
    %584 = vmatprep.subr.bf16.mxu0 0
    %585 = vmatpush1.bf16.msra.mxu0 0
    %586 = vmatprep.subr.bf16.mxu0 0
    %587 = vmatpush1.bf16.msra.mxu0 0
    %588 = vmatprep.subr.bf16.mxu0 0
    %589 = vmatpush1.bf16.msra.mxu0 0
    %590 = vmatprep.subr.bf16.mxu0 0
    %591 = vmatpush1.bf16.msra.mxu0 0
    %592 = vmatprep.subr.bf16.mxu0 0
    %593 = vmatpush1.bf16.msra.mxu0 0
    %594 = vmatprep.subr.bf16.mxu0 0
    %595 = vmatpush1.bf16.msra.mxu0 0
    %596 = vmatprep.mubr.bf16.mxu0 0
    %597 = vmatmul.mubr.bf16.gmra.mrb[0].mxu0 %v562
    %v598 = vpop.f32.mrb[0].mxu0
    %v599 = vadd.f32 0.0, %v598
    %v600 = vpop.f32.mrb[0].mxu0
    %v601 = vpop.f32.mrb[0].mxu0
    %v602 = vadd.f32 0.0, %v601
    %v603 = vpop.f32.mrb[0].mxu0
    %604 = vdwg.mxu0
    %v605 = vpack.c.bf16 %v602, %v599
    %s606 = scalar_lea.vmem [#allocation10], 32
    %v607 = vld [vmem:[%s606] sm:$0xf]
    %v608 = vld [vmem:[%s606 + $0x4] sm:$0xf]
    %v609 = vld [vmem:[%s606 + $0x8] sm:$0xf]
    %v610 = vld [vmem:[%s606 + $0xc] sm:$0xf]
    %v615 = vunpack.c.l.b16 %v607
    %v616 = vunpack.c.l.b16 %v608
    %v617 = vunpack.c.l.b16 %v609
    %v618 = vunpack.c.l.b16 %v610
    %v619 = vpack.c.b16 %v616, %v615
    %v620 = vpack.c.b16 %v618, %v617
    %v624 = vsel %vm452, %v605, 0
    %626 = vmatprep.subr.bf16.mxu0 0
    %627 = vmatpush1.bf16.msra.mxu0 %v619
    %628 = vmatprep.subr.bf16.mxu0 0
    %629 = vmatpush1.bf16.msra.mxu0 %v620
    %630 = vmatprep.subr.bf16.mxu0 0
    %631 = vmatpush1.bf16.msra.mxu0 0
    %632 = vmatprep.subr.bf16.mxu0 0
    %633 = vmatpush1.bf16.msra.mxu0 0
    %634 = vmatprep.subr.bf16.mxu0 0
    %635 = vmatpush1.bf16.msra.mxu0 0
    %636 = vmatprep.subr.bf16.mxu0 0
    %637 = vmatpush1.bf16.msra.mxu0 0
    %638 = vmatprep.subr.bf16.mxu0 0
    %639 = vmatpush1.bf16.msra.mxu0 0
    %640 = vmatprep.subr.bf16.mxu0 0
    %641 = vmatpush1.bf16.msra.mxu0 0
    %642 = vmatprep.subr.bf16.mxu0 0
    %643 = vmatpush1.bf16.msra.mxu0 0
    %644 = vmatprep.subr.bf16.mxu0 0
    %645 = vmatpush1.bf16.msra.mxu0 0
    %646 = vmatprep.subr.bf16.mxu0 0
    %647 = vmatpush1.bf16.msra.mxu0 0
    %648 = vmatprep.subr.bf16.mxu0 0
    %649 = vmatpush1.bf16.msra.mxu0 0
    %650 = vmatprep.subr.bf16.mxu0 0
    %651 = vmatpush1.bf16.msra.mxu0 0
    %652 = vmatprep.subr.bf16.mxu0 0
    %653 = vmatpush1.bf16.msra.mxu0 0
    %654 = vmatprep.subr.bf16.mxu0 0
    %655 = vmatpush1.bf16.msra.mxu0 0
    %656 = vmatprep.subr.bf16.mxu0 0
    %657 = vmatpush1.bf16.msra.mxu0 0
    %658 = vmatprep.mubr.bf16.mxu0 0
    %659 = vmatmul.mubr.bf16.gmra.mrb[0].mxu0 %v624
    %v660 = vpop.f32.mrb[0].mxu0
    %v661 = vadd.f32 0.0, %v660
    %v662 = vpop.f32.mrb[0].mxu0
    %v663 = vpop.f32.mrb[0].mxu0
    %v664 = vadd.f32 0.0, %v663
    %v665 = vpop.f32.mrb[0].mxu0
    %666 = vdwg.mxu0
    %v667 = vadd.f32 %v547, %v661
    %v668 = vadd.f32 %v550, %v664
    %s669 = scalar_lea.vmem [#allocation5], 24
    %v670 = vld [vmem:[%s669] sm:$0xf]
    %v671 = vld [vmem:[%s669 + $0x4] sm:$0xf]
    %v674 = vunpack.c.l.b16 %v670
    %v675 = vunpack.c.l.b16 %v671
    %v676 = vpack.c.b16 %v675, %v674
    %v678 = vsel %vm332, %v676, 0
    %680 = vmatprep.subr.bf16.mxu0 0
    %681 = vmatpush1.bf16.msra.mxu0 %v321
    %682 = vmatprep.subr.bf16.mxu0 0
    %683 = vmatpush1.bf16.msra.mxu0 %v322
    %684 = vmatprep.subr.bf16.mxu0 0
    %685 = vmatpush1.bf16.msra.mxu0 %v323
    %686 = vmatprep.subr.bf16.mxu0 0
    %687 = vmatpush1.bf16.msra.mxu0 %v324
    %688 = vmatprep.subr.bf16.mxu0 0
    %689 = vmatpush1.bf16.msra.mxu0 0
    %690 = vmatprep.subr.bf16.mxu0 0
    %691 = vmatpush1.bf16.msra.mxu0 0
    %692 = vmatprep.subr.bf16.mxu0 0
    %693 = vmatpush1.bf16.msra.mxu0 0
    %694 = vmatprep.subr.bf16.mxu0 0
    %695 = vmatpush1.bf16.msra.mxu0 0
    %696 = vmatprep.subr.bf16.mxu0 0
    %697 = vmatpush1.bf16.msra.mxu0 0
    %698 = vmatprep.subr.bf16.mxu0 0
    %699 = vmatpush1.bf16.msra.mxu0 0
    %700 = vmatprep.subr.bf16.mxu0 0
    %701 = vmatpush1.bf16.msra.mxu0 0
    %702 = vmatprep.subr.bf16.mxu0 0
    %703 = vmatpush1.bf16.msra.mxu0 0
    %704 = vmatprep.subr.bf16.mxu0 0
    %705 = vmatpush1.bf16.msra.mxu0 0
    %706 = vmatprep.subr.bf16.mxu0 0
    %707 = vmatpush1.bf16.msra.mxu0 0
    %708 = vmatprep.subr.bf16.mxu0 0
    %709 = vmatpush1.bf16.msra.mxu0 0
    %710 = vmatprep.subr.bf16.mxu0 0
    %711 = vmatpush1.bf16.msra.mxu0 0
    %712 = vmatprep.mubr.bf16.mxu0 0
    %713 = vmatmul.mubr.bf16.gmra.mrb[0].mxu0 %v678
    %v714 = vpop.f32.mrb[0].mxu0
    %v715 = vadd.f32 0.0, %v714
    %v716 = vpop.f32.mrb[0].mxu0
    %v717 = vpop.f32.mrb[0].mxu0
    %v718 = vadd.f32 0.0, %v717
    %v719 = vpop.f32.mrb[0].mxu0
    %720 = vdwg.mxu0
    %v721 = vpack.c.bf16 %v718, %v715
    %s722 = scalar_lea.vmem [#allocation10], 48
    %v723 = vld [vmem:[%s722] sm:$0xf]
    %v724 = vld [vmem:[%s722 + $0x4] sm:$0xf]
    %v725 = vld [vmem:[%s722 + $0x8] sm:$0xf]
    %v726 = vld [vmem:[%s722 + $0xc] sm:$0xf]
    %v731 = vunpack.c.l.b16 %v723
    %v732 = vunpack.c.l.b16 %v724
    %v733 = vunpack.c.l.b16 %v725
    %v734 = vunpack.c.l.b16 %v726
    %v735 = vpack.c.b16 %v732, %v731
    %v736 = vpack.c.b16 %v734, %v733
    %v740 = vsel %vm452, %v721, 0
    %742 = vmatprep.subr.bf16.mxu0 0
    %743 = vmatpush1.bf16.msra.mxu0 %v735
    %744 = vmatprep.subr.bf16.mxu0 0
    %745 = vmatpush1.bf16.msra.mxu0 %v736
    %746 = vmatprep.subr.bf16.mxu0 0
    %747 = vmatpush1.bf16.msra.mxu0 0
    %748 = vmatprep.subr.bf16.mxu0 0
    %749 = vmatpush1.bf16.msra.mxu0 0
    %750 = vmatprep.subr.bf16.mxu0 0
    %751 = vmatpush1.bf16.msra.mxu0 0
    %752 = vmatprep.subr.bf16.mxu0 0
    %753 = vmatpush1.bf16.msra.mxu0 0
    %754 = vmatprep.subr.bf16.mxu0 0
    %755 = vmatpush1.bf16.msra.mxu0 0
    %756 = vmatprep.subr.bf16.mxu0 0
    %757 = vmatpush1.bf16.msra.mxu0 0
    %758 = vmatprep.subr.bf16.mxu0 0
    %759 = vmatpush1.bf16.msra.mxu0 0
    %760 = vmatprep.subr.bf16.mxu0 0
    %761 = vmatpush1.bf16.msra.mxu0 0
    %762 = vmatprep.subr.bf16.mxu0 0
    %763 = vmatpush1.bf16.msra.mxu0 0
    %764 = vmatprep.subr.bf16.mxu0 0
    %765 = vmatpush1.bf16.msra.mxu0 0
    %766 = vmatprep.subr.bf16.mxu0 0
    %767 = vmatpush1.bf16.msra.mxu0 0
    %768 = vmatprep.subr.bf16.mxu0 0
    %769 = vmatpush1.bf16.msra.mxu0 0
    %770 = vmatprep.subr.bf16.mxu0 0
    %771 = vmatpush1.bf16.msra.mxu0 0
    %772 = vmatprep.subr.bf16.mxu0 0
    %773 = vmatpush1.bf16.msra.mxu0 0
    %774 = vmatprep.mubr.bf16.mxu0 0
    %775 = vmatmul.mubr.bf16.gmra.mrb[0].mxu0 %v740
    %v776 = vpop.f32.mrb[0].mxu0
    %v777 = vadd.f32 0.0, %v776
    %v778 = vpop.f32.mrb[0].mxu0
    %v779 = vpop.f32.mrb[0].mxu0
    %v780 = vadd.f32 0.0, %v779
    %v781 = vpop.f32.mrb[0].mxu0
    %782 = vdwg.mxu0
    %v783 = vadd.f32 %v667, %v777
    %v784 = vadd.f32 %v668, %v780
    %s785 = scalar_lea.vmem [#allocation5], 32
    %v786 = vld [vmem:[%s785] sm:$0xf]
    %v787 = vld [vmem:[%s785 + $0x4] sm:$0xf]
    %v790 = vunpack.c.l.b16 %v786
    %v791 = vunpack.c.l.b16 %v787
    %v792 = vpack.c.b16 %v791, %v790
    %v794 = vsel %vm332, %v792, 0
    %796 = vmatprep.subr.bf16.mxu0 0
    %797 = vmatpush1.bf16.msra.mxu0 %v321
    %798 = vmatprep.subr.bf16.mxu0 0
    %799 = vmatpush1.bf16.msra.mxu0 %v322
    %800 = vmatprep.subr.bf16.mxu0 0
    %801 = vmatpush1.bf16.msra.mxu0 %v323
    %802 = vmatprep.subr.bf16.mxu0 0
    %803 = vmatpush1.bf16.msra.mxu0 %v324
    %804 = vmatprep.subr.bf16.mxu0 0
    %805 = vmatpush1.bf16.msra.mxu0 0
    %806 = vmatprep.subr.bf16.mxu0 0
    %807 = vmatpush1.bf16.msra.mxu0 0
    %808 = vmatprep.subr.bf16.mxu0 0
    %809 = vmatpush1.bf16.msra.mxu0 0
    %810 = vmatprep.subr.bf16.mxu0 0
    %811 = vmatpush1.bf16.msra.mxu0 0
    %812 = vmatprep.subr.bf16.mxu0 0
    %813 = vmatpush1.bf16.msra.mxu0 0
    %814 = vmatprep.subr.bf16.mxu0 0
    %815 = vmatpush1.bf16.msra.mxu0 0
    %816 = vmatprep.subr.bf16.mxu0 0
    %817 = vmatpush1.bf16.msra.mxu0 0
    %818 = vmatprep.subr.bf16.mxu0 0
    %819 = vmatpush1.bf16.msra.mxu0 0
    %820 = vmatprep.subr.bf16.mxu0 0
    %821 = vmatpush1.bf16.msra.mxu0 0
    %822 = vmatprep.subr.bf16.mxu0 0
    %823 = vmatpush1.bf16.msra.mxu0 0
    %824 = vmatprep.subr.bf16.mxu0 0
    %825 = vmatpush1.bf16.msra.mxu0 0
    %826 = vmatprep.subr.bf16.mxu0 0
    %827 = vmatpush1.bf16.msra.mxu0 0
    %828 = vmatprep.mubr.bf16.mxu0 0
    %829 = vmatmul.mubr.bf16.gmra.mrb[0].mxu0 %v794
    %v830 = vpop.f32.mrb[0].mxu0
    %v831 = vadd.f32 0.0, %v830
    %v832 = vpop.f32.mrb[0].mxu0
    %v833 = vpop.f32.mrb[0].mxu0
    %v834 = vadd.f32 0.0, %v833
    %v835 = vpop.f32.mrb[0].mxu0
    %836 = vdwg.mxu0
    %v837 = vpack.c.bf16 %v834, %v831
    %s838 = scalar_lea.vmem [#allocation10], 64
    %v839 = vld [vmem:[%s838] sm:$0xf]
    %v840 = vld [vmem:[%s838 + $0x4] sm:$0xf]
    %v841 = vld [vmem:[%s838 + $0x8] sm:$0xf]
    %v842 = vld [vmem:[%s838 + $0xc] sm:$0xf]
    %v847 = vunpack.c.l.b16 %v839
    %v848 = vunpack.c.l.b16 %v840
    %v849 = vunpack.c.l.b16 %v841
    %v850 = vunpack.c.l.b16 %v842
    %v851 = vpack.c.b16 %v848, %v847
    %v852 = vpack.c.b16 %v850, %v849
    %v856 = vsel %vm452, %v837, 0
    %858 = vmatprep.subr.bf16.mxu0 0
    %859 = vmatpush1.bf16.msra.mxu0 %v851
    %860 = vmatprep.subr.bf16.mxu0 0
    %861 = vmatpush1.bf16.msra.mxu0 %v852
    %862 = vmatprep.subr.bf16.mxu0 0
    %863 = vmatpush1.bf16.msra.mxu0 0
    %864 = vmatprep.subr.bf16.mxu0 0
    %865 = vmatpush1.bf16.msra.mxu0 0
    %866 = vmatprep.subr.bf16.mxu0 0
    %867 = vmatpush1.bf16.msra.mxu0 0
    %868 = vmatprep.subr.bf16.mxu0 0
    %869 = vmatpush1.bf16.msra.mxu0 0
    %870 = vmatprep.subr.bf16.mxu0 0
    %871 = vmatpush1.bf16.msra.mxu0 0
    %872 = vmatprep.subr.bf16.mxu0 0
    %873 = vmatpush1.bf16.msra.mxu0 0
    %874 = vmatprep.subr.bf16.mxu0 0
    %875 = vmatpush1.bf16.msra.mxu0 0
    %876 = vmatprep.subr.bf16.mxu0 0
    %877 = vmatpush1.bf16.msra.mxu0 0
    %878 = vmatprep.subr.bf16.mxu0 0
    %879 = vmatpush1.bf16.msra.mxu0 0
    %880 = vmatprep.subr.bf16.mxu0 0
    %881 = vmatpush1.bf16.msra.mxu0 0
    %882 = vmatprep.subr.bf16.mxu0 0
    %883 = vmatpush1.bf16.msra.mxu0 0
    %884 = vmatprep.subr.bf16.mxu0 0
    %885 = vmatpush1.bf16.msra.mxu0 0
    %886 = vmatprep.subr.bf16.mxu0 0
    %887 = vmatpush1.bf16.msra.mxu0 0
    %888 = vmatprep.subr.bf16.mxu0 0
    %889 = vmatpush1.bf16.msra.mxu0 0
    %890 = vmatprep.mubr.bf16.mxu0 0
    %891 = vmatmul.mubr.bf16.gmra.mrb[0].mxu0 %v856
    %v892 = vpop.f32.mrb[0].mxu0
    %v893 = vadd.f32 0.0, %v892
    %v894 = vpop.f32.mrb[0].mxu0
    %v895 = vpop.f32.mrb[0].mxu0
    %v896 = vadd.f32 0.0, %v895
    %v897 = vpop.f32.mrb[0].mxu0
    %898 = vdwg.mxu0
    %v899 = vadd.f32 %v783, %v893
    %v900 = vadd.f32 %v784, %v896
    %s901 = scalar_lea.vmem [#allocation5], 40
    %v902 = vld [vmem:[%s901] sm:$0xf]
    %v903 = vld [vmem:[%s901 + $0x4] sm:$0xf]
    %v906 = vunpack.c.l.b16 %v902
    %v907 = vunpack.c.l.b16 %v903
    %v908 = vpack.c.b16 %v907, %v906
    %v910 = vsel %vm332, %v908, 0
    %912 = vmatprep.subr.bf16.mxu0 0
    %913 = vmatpush1.bf16.msra.mxu0 %v321
    %914 = vmatprep.subr.bf16.mxu0 0
    %915 = vmatpush1.bf16.msra.mxu0 %v322
    %916 = vmatprep.subr.bf16.mxu0 0
    %917 = vmatpush1.bf16.msra.mxu0 %v323
    %918 = vmatprep.subr.bf16.mxu0 0
    %919 = vmatpush1.bf16.msra.mxu0 %v324
    %920 = vmatprep.subr.bf16.mxu0 0
    %921 = vmatpush1.bf16.msra.mxu0 0
    %922 = vmatprep.subr.bf16.mxu0 0
    %923 = vmatpush1.bf16.msra.mxu0 0
    %924 = vmatprep.subr.bf16.mxu0 0
    %925 = vmatpush1.bf16.msra.mxu0 0
    %926 = vmatprep.subr.bf16.mxu0 0
    %927 = vmatpush1.bf16.msra.mxu0 0
    %928 = vmatprep.subr.bf16.mxu0 0
    %929 = vmatpush1.bf16.msra.mxu0 0
    %930 = vmatprep.subr.bf16.mxu0 0
    %931 = vmatpush1.bf16.msra.mxu0 0
    %932 = vmatprep.subr.bf16.mxu0 0
    %933 = vmatpush1.bf16.msra.mxu0 0
    %934 = vmatprep.subr.bf16.mxu0 0
    %935 = vmatpush1.bf16.msra.mxu0 0
    %936 = vmatprep.subr.bf16.mxu0 0
    %937 = vmatpush1.bf16.msra.mxu0 0
    %938 = vmatprep.subr.bf16.mxu0 0
    %939 = vmatpush1.bf16.msra.mxu0 0
    %940 = vmatprep.subr.bf16.mxu0 0
    %941 = vmatpush1.bf16.msra.mxu0 0
    %942 = vmatprep.subr.bf16.mxu0 0
    %943 = vmatpush1.bf16.msra.mxu0 0
    %944 = vmatprep.mubr.bf16.mxu0 0
    %945 = vmatmul.mubr.bf16.gmra.mrb[0].mxu0 %v910
    %v946 = vpop.f32.mrb[0].mxu0
    %v947 = vadd.f32 0.0, %v946
    %v948 = vpop.f32.mrb[0].mxu0
    %v949 = vpop.f32.mrb[0].mxu0
    %v950 = vadd.f32 0.0, %v949
    %v951 = vpop.f32.mrb[0].mxu0
    %952 = vdwg.mxu0
    %v953 = vpack.c.bf16 %v950, %v947
    %s954 = scalar_lea.vmem [#allocation10], 80
    %v955 = vld [vmem:[%s954] sm:$0xf]
    %v956 = vld [vmem:[%s954 + $0x4] sm:$0xf]
    %v957 = vld [vmem:[%s954 + $0x8] sm:$0xf]
    %v958 = vld [vmem:[%s954 + $0xc] sm:$0xf]
    %v963 = vunpack.c.l.b16 %v955
    %v964 = vunpack.c.l.b16 %v956
    %v965 = vunpack.c.l.b16 %v957
    %v966 = vunpack.c.l.b16 %v958
    %v967 = vpack.c.b16 %v964, %v963
    %v968 = vpack.c.b16 %v966, %v965
    %v972 = vsel %vm452, %v953, 0
    %974 = vmatprep.subr.bf16.mxu0 0
    %975 = vmatpush1.bf16.msra.mxu0 %v967
    %976 = vmatprep.subr.bf16.mxu0 0
    %977 = vmatpush1.bf16.msra.mxu0 %v968
    %978 = vmatprep.subr.bf16.mxu0 0
    %979 = vmatpush1.bf16.msra.mxu0 0
    %980 = vmatprep.subr.bf16.mxu0 0
    %981 = vmatpush1.bf16.msra.mxu0 0
    %982 = vmatprep.subr.bf16.mxu0 0
    %983 = vmatpush1.bf16.msra.mxu0 0
    %984 = vmatprep.subr.bf16.mxu0 0
    %985 = vmatpush1.bf16.msra.mxu0 0
    %986 = vmatprep.subr.bf16.mxu0 0
    %987 = vmatpush1.bf16.msra.mxu0 0
    %988 = vmatprep.subr.bf16.mxu0 0
    %989 = vmatpush1.bf16.msra.mxu0 0
    %990 = vmatprep.subr.bf16.mxu0 0
    %991 = vmatpush1.bf16.msra.mxu0 0
    %992 = vmatprep.subr.bf16.mxu0 0
    %993 = vmatpush1.bf16.msra.mxu0 0
    %994 = vmatprep.subr.bf16.mxu0 0
    %995 = vmatpush1.bf16.msra.mxu0 0
    %996 = vmatprep.subr.bf16.mxu0 0
    %997 = vmatpush1.bf16.msra.mxu0 0
    %998 = vmatprep.subr.bf16.mxu0 0
    %999 = vmatpush1.bf16.msra.mxu0 0
    %1000 = vmatprep.subr.bf16.mxu0 0
    %1001 = vmatpush1.bf16.msra.mxu0 0
    %1002 = vmatprep.subr.bf16.mxu0 0
    %1003 = vmatpush1.bf16.msra.mxu0 0
    %1004 = vmatprep.subr.bf16.mxu0 0
    %1005 = vmatpush1.bf16.msra.mxu0 0
    %1006 = vmatprep.mubr.bf16.mxu0 0
    %1007 = vmatmul.mubr.bf16.gmra.mrb[0].mxu0 %v972
    %v1008 = vpop.f32.mrb[0].mxu0
    %v1009 = vadd.f32 0.0, %v1008
    %v1010 = vpop.f32.mrb[0].mxu0
    %v1011 = vpop.f32.mrb[0].mxu0
    %v1012 = vadd.f32 0.0, %v1011
    %v1013 = vpop.f32.mrb[0].mxu0
    %1014 = vdwg.mxu0
    %v1015 = vadd.f32 %v899, %v1009
    %v1016 = vadd.f32 %v900, %v1012
    %s1017 = scalar_lea.vmem [#allocation5], 48
    %v1018 = vld [vmem:[%s1017] sm:$0xf]
    %v1019 = vld [vmem:[%s1017 + $0x4] sm:$0xf]
    %v1022 = vunpack.c.l.b16 %v1018
    %v1023 = vunpack.c.l.b16 %v1019
    %v1024 = vpack.c.b16 %v1023, %v1022
    %v1026 = vsel %vm332, %v1024, 0
    %1028 = vmatprep.subr.bf16.mxu0 0
    %1029 = vmatpush1.bf16.msra.mxu0 %v321
    %1030 = vmatprep.subr.bf16.mxu0 0
    %1031 = vmatpush1.bf16.msra.mxu0 %v322
    %1032 = vmatprep.subr.bf16.mxu0 0
    %1033 = vmatpush1.bf16.msra.mxu0 %v323
    %1034 = vmatprep.subr.bf16.mxu0 0
    %1035 = vmatpush1.bf16.msra.mxu0 %v324
    %1036 = vmatprep.subr.bf16.mxu0 0
    %1037 = vmatpush1.bf16.msra.mxu0 0
    %1038 = vmatprep.subr.bf16.mxu0 0
    %1039 = vmatpush1.bf16.msra.mxu0 0
    %1040 = vmatprep.subr.bf16.mxu0 0
    %1041 = vmatpush1.bf16.msra.mxu0 0
    %1042 = vmatprep.subr.bf16.mxu0 0
    %1043 = vmatpush1.bf16.msra.mxu0 0
    %1044 = vmatprep.subr.bf16.mxu0 0
    %1045 = vmatpush1.bf16.msra.mxu0 0
    %1046 = vmatprep.subr.bf16.mxu0 0
    %1047 = vmatpush1.bf16.msra.mxu0 0
    %1048 = vmatprep.subr.bf16.mxu0 0
    %1049 = vmatpush1.bf16.msra.mxu0 0
    %1050 = vmatprep.subr.bf16.mxu0 0
    %1051 = vmatpush1.bf16.msra.mxu0 0
    %1052 = vmatprep.subr.bf16.mxu0 0
    %1053 = vmatpush1.bf16.msra.mxu0 0
    %1054 = vmatprep.subr.bf16.mxu0 0
    %1055 = vmatpush1.bf16.msra.mxu0 0
    %1056 = vmatprep.subr.bf16.mxu0 0
    %1057 = vmatpush1.bf16.msra.mxu0 0
    %1058 = vmatprep.subr.bf16.mxu0 0
    %1059 = vmatpush1.bf16.msra.mxu0 0
    %1060 = vmatprep.mubr.bf16.mxu0 0
    %1061 = vmatmul.mubr.bf16.gmra.mrb[0].mxu0 %v1026
    %v1062 = vpop.f32.mrb[0].mxu0
    %v1063 = vadd.f32 0.0, %v1062
    %v1064 = vpop.f32.mrb[0].mxu0
    %v1065 = vpop.f32.mrb[0].mxu0
    %v1066 = vadd.f32 0.0, %v1065
    %v1067 = vpop.f32.mrb[0].mxu0
    %1068 = vdwg.mxu0
    %v1069 = vpack.c.bf16 %v1066, %v1063
    %s1070 = scalar_lea.vmem [#allocation10], 96
    %v1071 = vld [vmem:[%s1070] sm:$0xf]
    %v1072 = vld [vmem:[%s1070 + $0x4] sm:$0xf]
    %v1073 = vld [vmem:[%s1070 + $0x8] sm:$0xf]
    %v1074 = vld [vmem:[%s1070 + $0xc] sm:$0xf]
    %v1079 = vunpack.c.l.b16 %v1071
    %v1080 = vunpack.c.l.b16 %v1072
    %v1081 = vunpack.c.l.b16 %v1073
    %v1082 = vunpack.c.l.b16 %v1074
    %v1083 = vpack.c.b16 %v1080, %v1079
    %v1084 = vpack.c.b16 %v1082, %v1081
    %v1088 = vsel %vm452, %v1069, 0
    %1090 = vmatprep.subr.bf16.mxu0 0
    %1091 = vmatpush1.bf16.msra.mxu0 %v1083
    %1092 = vmatprep.subr.bf16.mxu0 0
    %1093 = vmatpush1.bf16.msra.mxu0 %v1084
    %1094 = vmatprep.subr.bf16.mxu0 0
    %1095 = vmatpush1.bf16.msra.mxu0 0
    %1096 = vmatprep.subr.bf16.mxu0 0
    %1097 = vmatpush1.bf16.msra.mxu0 0
    %1098 = vmatprep.subr.bf16.mxu0 0
    %1099 = vmatpush1.bf16.msra.mxu0 0
    %1100 = vmatprep.subr.bf16.mxu0 0
    %1101 = vmatpush1.bf16.msra.mxu0 0
    %1102 = vmatprep.subr.bf16.mxu0 0
    %1103 = vmatpush1.bf16.msra.mxu0 0
    %1104 = vmatprep.subr.bf16.mxu0 0
    %1105 = vmatpush1.bf16.msra.mxu0 0
    %1106 = vmatprep.subr.bf16.mxu0 0
    %1107 = vmatpush1.bf16.msra.mxu0 0
    %1108 = vmatprep.subr.bf16.mxu0 0
    %1109 = vmatpush1.bf16.msra.mxu0 0
    %1110 = vmatprep.subr.bf16.mxu0 0
    %1111 = vmatpush1.bf16.msra.mxu0 0
    %1112 = vmatprep.subr.bf16.mxu0 0
    %1113 = vmatpush1.bf16.msra.mxu0 0
    %1114 = vmatprep.subr.bf16.mxu0 0
    %1115 = vmatpush1.bf16.msra.mxu0 0
    %1116 = vmatprep.subr.bf16.mxu0 0
    %1117 = vmatpush1.bf16.msra.mxu0 0
    %1118 = vmatprep.subr.bf16.mxu0 0
    %1119 = vmatpush1.bf16.msra.mxu0 0
    %1120 = vmatprep.subr.bf16.mxu0 0
    %1121 = vmatpush1.bf16.msra.mxu0 0
    %1122 = vmatprep.mubr.bf16.mxu0 0
    %1123 = vmatmul.mubr.bf16.gmra.mrb[0].mxu0 %v1088
    %v1124 = vpop.f32.mrb[0].mxu0
    %v1125 = vadd.f32 0.0, %v1124
    %v1126 = vpop.f32.mrb[0].mxu0
    %v1127 = vpop.f32.mrb[0].mxu0
    %v1128 = vadd.f32 0.0, %v1127
    %v1129 = vpop.f32.mrb[0].mxu0
    %1130 = vdwg.mxu0
    %v1131 = vadd.f32 %v1015, %v1125
    %v1132 = vadd.f32 %v1016, %v1128
    %s1133 = scalar_lea.vmem [#allocation5], 56
    %v1134 = vld [vmem:[%s1133] sm:$0xf]
    %v1135 = vld [vmem:[%s1133 + $0x4] sm:$0xf]
    %v1138 = vunpack.c.l.b16 %v1134
    %v1139 = vunpack.c.l.b16 %v1135
    %v1140 = vpack.c.b16 %v1139, %v1138
    %v1142 = vsel %vm332, %v1140, 0
    %1144 = vmatprep.subr.bf16.mxu0 0
    %1145 = vmatpush1.bf16.msra.mxu0 %v321
    %1146 = vmatprep.subr.bf16.mxu0 0
    %1147 = vmatpush1.bf16.msra.mxu0 %v322
    %1148 = vmatprep.subr.bf16.mxu0 0
    %1149 = vmatpush1.bf16.msra.mxu0 %v323
    %1150 = vmatprep.subr.bf16.mxu0 0
    %1151 = vmatpush1.bf16.msra.mxu0 %v324
    %1152 = vmatprep.subr.bf16.mxu0 0
    %1153 = vmatpush1.bf16.msra.mxu0 0
    %1154 = vmatprep.subr.bf16.mxu0 0
    %1155 = vmatpush1.bf16.msra.mxu0 0
    %1156 = vmatprep.subr.bf16.mxu0 0
    %1157 = vmatpush1.bf16.msra.mxu0 0
    %1158 = vmatprep.subr.bf16.mxu0 0
    %1159 = vmatpush1.bf16.msra.mxu0 0
    %1160 = vmatprep.subr.bf16.mxu0 0
    %1161 = vmatpush1.bf16.msra.mxu0 0
    %1162 = vmatprep.subr.bf16.mxu0 0
    %1163 = vmatpush1.bf16.msra.mxu0 0
    %1164 = vmatprep.subr.bf16.mxu0 0
    %1165 = vmatpush1.bf16.msra.mxu0 0
    %1166 = vmatprep.subr.bf16.mxu0 0
    %1167 = vmatpush1.bf16.msra.mxu0 0
    %1168 = vmatprep.subr.bf16.mxu0 0
    %1169 = vmatpush1.bf16.msra.mxu0 0
    %1170 = vmatprep.subr.bf16.mxu0 0
    %1171 = vmatpush1.bf16.msra.mxu0 0
    %1172 = vmatprep.subr.bf16.mxu0 0
    %1173 = vmatpush1.bf16.msra.mxu0 0
    %1174 = vmatprep.subr.bf16.mxu0 0
    %1175 = vmatpush1.bf16.msra.mxu0 0
    %1176 = vmatprep.mubr.bf16.mxu0 0
    %1177 = vmatmul.mubr.bf16.gmra.mrb[0].mxu0 %v1142
    %v1178 = vpop.f32.mrb[0].mxu0
    %v1179 = vadd.f32 0.0, %v1178
    %v1180 = vpop.f32.mrb[0].mxu0
    %v1181 = vpop.f32.mrb[0].mxu0
    %v1182 = vadd.f32 0.0, %v1181
    %v1183 = vpop.f32.mrb[0].mxu0
    %1184 = vdwg.mxu0
    %v1185 = vpack.c.bf16 %v1182, %v1179
    %s1186 = scalar_lea.vmem [#allocation10], 112
    %v1187 = vld [vmem:[%s1186] sm:$0xf]
    %v1188 = vld [vmem:[%s1186 + $0x4] sm:$0xf]
    %v1189 = vld [vmem:[%s1186 + $0x8] sm:$0xf]
    %v1190 = vld [vmem:[%s1186 + $0xc] sm:$0xf]
    %v1195 = vunpack.c.l.b16 %v1187
    %v1196 = vunpack.c.l.b16 %v1188
    %v1197 = vunpack.c.l.b16 %v1189
    %v1198 = vunpack.c.l.b16 %v1190
    %v1199 = vpack.c.b16 %v1196, %v1195
    %v1200 = vpack.c.b16 %v1198, %v1197
    %v1204 = vsel %vm452, %v1185, 0
    %1206 = vmatprep.subr.bf16.mxu0 0
    %1207 = vmatpush1.bf16.msra.mxu0 %v1199
    %1208 = vmatprep.subr.bf16.mxu0 0
    %1209 = vmatpush1.bf16.msra.mxu0 %v1200
    %1210 = vmatprep.subr.bf16.mxu0 0
    %1211 = vmatpush1.bf16.msra.mxu0 0
    %1212 = vmatprep.subr.bf16.mxu0 0
    %1213 = vmatpush1.bf16.msra.mxu0 0
    %1214 = vmatprep.subr.bf16.mxu0 0
    %1215 = vmatpush1.bf16.msra.mxu0 0
    %1216 = vmatprep.subr.bf16.mxu0 0
    %1217 = vmatpush1.bf16.msra.mxu0 0
    %1218 = vmatprep.subr.bf16.mxu0 0
    %1219 = vmatpush1.bf16.msra.mxu0 0
    %1220 = vmatprep.subr.bf16.mxu0 0
    %1221 = vmatpush1.bf16.msra.mxu0 0
    %1222 = vmatprep.subr.bf16.mxu0 0
    %1223 = vmatpush1.bf16.msra.mxu0 0
    %1224 = vmatprep.subr.bf16.mxu0 0
    %1225 = vmatpush1.bf16.msra.mxu0 0
    %1226 = vmatprep.subr.bf16.mxu0 0
    %1227 = vmatpush1.bf16.msra.mxu0 0
    %1228 = vmatprep.subr.bf16.mxu0 0
    %1229 = vmatpush1.bf16.msra.mxu0 0
    %1230 = vmatprep.subr.bf16.mxu0 0
    %1231 = vmatpush1.bf16.msra.mxu0 0
    %1232 = vmatprep.subr.bf16.mxu0 0
    %1233 = vmatpush1.bf16.msra.mxu0 0
    %1234 = vmatprep.subr.bf16.mxu0 0
    %1235 = vmatpush1.bf16.msra.mxu0 0
    %1236 = vmatprep.subr.bf16.mxu0 0
    %1237 = vmatpush1.bf16.msra.mxu0 0
    %1238 = vmatprep.mubr.bf16.mxu0 0
    %1239 = vmatmul.mubr.bf16.gmra.mrb[0].mxu0 %v1204
    %v1240 = vpop.f32.mrb[0].mxu0
    %v1241 = vadd.f32 0.0, %v1240
    %v1242 = vpop.f32.mrb[0].mxu0
    %v1243 = vpop.f32.mrb[0].mxu0
    %v1244 = vadd.f32 0.0, %v1243
    %v1245 = vpop.f32.mrb[0].mxu0
    %1246 = vdwg.mxu0
    %v1247 = vadd.f32 %v1131, %v1241
    %v1248 = vadd.f32 %v1132, %v1244
    %s1249 = scalar_lea.vmem [#allocation5], 64
    %v1250 = vld [vmem:[%s1249] sm:$0xf]
    %v1251 = vld [vmem:[%s1249 + $0x4] sm:$0xf]
    %v1254 = vunpack.c.l.b16 %v1250
    %v1255 = vunpack.c.l.b16 %v1251
    %v1256 = vpack.c.b16 %v1255, %v1254
    %v1258 = vsel %vm332, %v1256, 0
    %1260 = vmatprep.subr.bf16.mxu0 0
    %1261 = vmatpush1.bf16.msra.mxu0 %v321
    %1262 = vmatprep.subr.bf16.mxu0 0
    %1263 = vmatpush1.bf16.msra.mxu0 %v322
    %1264 = vmatprep.subr.bf16.mxu0 0
    %1265 = vmatpush1.bf16.msra.mxu0 %v323
    %1266 = vmatprep.subr.bf16.mxu0 0
    %1267 = vmatpush1.bf16.msra.mxu0 %v324
    %1268 = vmatprep.subr.bf16.mxu0 0
    %1269 = vmatpush1.bf16.msra.mxu0 0
    %1270 = vmatprep.subr.bf16.mxu0 0
    %1271 = vmatpush1.bf16.msra.mxu0 0
    %1272 = vmatprep.subr.bf16.mxu0 0
    %1273 = vmatpush1.bf16.msra.mxu0 0
    %1274 = vmatprep.subr.bf16.mxu0 0
    %1275 = vmatpush1.bf16.msra.mxu0 0
    %1276 = vmatprep.subr.bf16.mxu0 0
    %1277 = vmatpush1.bf16.msra.mxu0 0
    %1278 = vmatprep.subr.bf16.mxu0 0
    %1279 = vmatpush1.bf16.msra.mxu0 0
    %1280 = vmatprep.subr.bf16.mxu0 0
    %1281 = vmatpush1.bf16.msra.mxu0 0
    %1282 = vmatprep.subr.bf16.mxu0 0
    %1283 = vmatpush1.bf16.msra.mxu0 0
    %1284 = vmatprep.subr.bf16.mxu0 0
    %1285 = vmatpush1.bf16.msra.mxu0 0
    %1286 = vmatprep.subr.bf16.mxu0 0
    %1287 = vmatpush1.bf16.msra.mxu0 0
    %1288 = vmatprep.subr.bf16.mxu0 0
    %1289 = vmatpush1.bf16.msra.mxu0 0
    %1290 = vmatprep.subr.bf16.mxu0 0
    %1291 = vmatpush1.bf16.msra.mxu0 0
    %1292 = vmatprep.mubr.bf16.mxu0 0
    %1293 = vmatmul.mubr.bf16.gmra.mrb[0].mxu0 %v1258
    %v1294 = vpop.f32.mrb[0].mxu0
    %v1295 = vadd.f32 0.0, %v1294
    %v1296 = vpop.f32.mrb[0].mxu0
    %v1297 = vpop.f32.mrb[0].mxu0
    %v1298 = vadd.f32 0.0, %v1297
    %v1299 = vpop.f32.mrb[0].mxu0
    %1300 = vdwg.mxu0
    %v1301 = vpack.c.bf16 %v1298, %v1295
    %s1302 = scalar_lea.vmem [#allocation10], 128
    %v1303 = vld [vmem:[%s1302] sm:$0xf]
    %v1304 = vld [vmem:[%s1302 + $0x4] sm:$0xf]
    %v1305 = vld [vmem:[%s1302 + $0x8] sm:$0xf]
    %v1306 = vld [vmem:[%s1302 + $0xc] sm:$0xf]
    %v1311 = vunpack.c.l.b16 %v1303
    %v1312 = vunpack.c.l.b16 %v1304
    %v1313 = vunpack.c.l.b16 %v1305
    %v1314 = vunpack.c.l.b16 %v1306
    %v1315 = vpack.c.b16 %v1312, %v1311
    %v1316 = vpack.c.b16 %v1314, %v1313
    %v1320 = vsel %vm452, %v1301, 0
    %1322 = vmatprep.subr.bf16.mxu0 0
    %1323 = vmatpush1.bf16.msra.mxu0 %v1315
    %1324 = vmatprep.subr.bf16.mxu0 0
    %1325 = vmatpush1.bf16.msra.mxu0 %v1316
    %1326 = vmatprep.subr.bf16.mxu0 0
    %1327 = vmatpush1.bf16.msra.mxu0 0
    %1328 = vmatprep.subr.bf16.mxu0 0
    %1329 = vmatpush1.bf16.msra.mxu0 0
    %1330 = vmatprep.subr.bf16.mxu0 0
    %1331 = vmatpush1.bf16.msra.mxu0 0
    %1332 = vmatprep.subr.bf16.mxu0 0
    %1333 = vmatpush1.bf16.msra.mxu0 0
    %1334 = vmatprep.subr.bf16.mxu0 0
    %1335 = vmatpush1.bf16.msra.mxu0 0
    %1336 = vmatprep.subr.bf16.mxu0 0
    %1337 = vmatpush1.bf16.msra.mxu0 0
    %1338 = vmatprep.subr.bf16.mxu0 0
    %1339 = vmatpush1.bf16.msra.mxu0 0
    %1340 = vmatprep.subr.bf16.mxu0 0
    %1341 = vmatpush1.bf16.msra.mxu0 0
    %1342 = vmatprep.subr.bf16.mxu0 0
    %1343 = vmatpush1.bf16.msra.mxu0 0
    %1344 = vmatprep.subr.bf16.mxu0 0
    %1345 = vmatpush1.bf16.msra.mxu0 0
    %1346 = vmatprep.subr.bf16.mxu0 0
    %1347 = vmatpush1.bf16.msra.mxu0 0
    %1348 = vmatprep.subr.bf16.mxu0 0
    %1349 = vmatpush1.bf16.msra.mxu0 0
    %1350 = vmatprep.subr.bf16.mxu0 0
    %1351 = vmatpush1.bf16.msra.mxu0 0
    %1352 = vmatprep.subr.bf16.mxu0 0
    %1353 = vmatpush1.bf16.msra.mxu0 0
    %1354 = vmatprep.mubr.bf16.mxu0 0
    %1355 = vmatmul.mubr.bf16.gmra.mrb[0].mxu0 %v1320
    %v1356 = vpop.f32.mrb[0].mxu0
    %v1357 = vadd.f32 0.0, %v1356
    %v1358 = vpop.f32.mrb[0].mxu0
    %v1359 = vpop.f32.mrb[0].mxu0
    %v1360 = vadd.f32 0.0, %v1359
    %v1361 = vpop.f32.mrb[0].mxu0
    %1362 = vdwg.mxu0
    %v1363 = vadd.f32 %v1247, %v1357
    %v1364 = vadd.f32 %v1248, %v1360
    %v1365 = vld [vmem:[#allocation11] sm:$0x1]
    %v1367 = vlaneseq
    %v1368 = vshrl.u32 %v1367, 7
    %v1369 = vsub.s32 0, %v1368
    %v1370 = vrot.slane %v1365, %v1369
    %v1372 = vadd.f32 %v1363, %v1370
    %v1373 = vadd.f32 %v1364, %v1370
    %v1374 = vmax.f32 %v1372, 0.0
    %v1375 = vmax.f32 %v1373, 0.0
    %v1376 = vpack.c.bf16 %v1375, %v1374
    %v1377 = vld [vmem:[#allocation13] sm:$0xf]
    %v1378 = vld [vmem:[#allocation13 + $0x4] sm:$0xf]
    %v1379 = vld [vmem:[#allocation13 + $0x8] sm:$0xf]
    %v1380 = vld [vmem:[#allocation13 + $0xc] sm:$0xf]
    %v1381 = vld [vmem:[#allocation14] sm:$0x1]
    %v1383 = vlaneseq
    %v1384 = vshrl.u32 %v1383, 7
    %v1385 = vsub.s32 0, %v1384
    %v1386 = vrot.slane %v1381, %v1385
    %v1392 = vunpack.c.l.b16 %v1377
    %v1393 = vunpack.c.l.b16 %v1378
    %v1394 = vunpack.c.l.b16 %v1379
    %v1395 = vunpack.c.l.b16 %v1380
    %v1396 = vpack.c.b16 %v1393, %v1392
    %v1397 = vpack.c.b16 %v1395, %v1394
    %v1401 = vsel %vm452, %v1376, 0
    %1403 = vmatprep.subr.bf16.mxu0 0
    %1404 = vmatpush1.bf16.msra.mxu0 %v1396
    %1405 = vmatprep.subr.bf16.mxu0 0
    %1406 = vmatpush1.bf16.msra.mxu0 %v1397
    %1407 = vmatprep.subr.bf16.mxu0 0
    %1408 = vmatpush1.bf16.msra.mxu0 0
    %1409 = vmatprep.subr.bf16.mxu0 0
    %1410 = vmatpush1.bf16.msra.mxu0 0
    %1411 = vmatprep.subr.bf16.mxu0 0
    %1412 = vmatpush1.bf16.msra.mxu0 0
    %1413 = vmatprep.subr.bf16.mxu0 0
    %1414 = vmatpush1.bf16.msra.mxu0 0
    %1415 = vmatprep.subr.bf16.mxu0 0
    %1416 = vmatpush1.bf16.msra.mxu0 0
    %1417 = vmatprep.subr.bf16.mxu0 0
    %1418 = vmatpush1.bf16.msra.mxu0 0
    %1419 = vmatprep.subr.bf16.mxu0 0
    %1420 = vmatpush1.bf16.msra.mxu0 0
    %1421 = vmatprep.subr.bf16.mxu0 0
    %1422 = vmatpush1.bf16.msra.mxu0 0
    %1423 = vmatprep.subr.bf16.mxu0 0
    %1424 = vmatpush1.bf16.msra.mxu0 0
    %1425 = vmatprep.subr.bf16.mxu0 0
    %1426 = vmatpush1.bf16.msra.mxu0 0
    %1427 = vmatprep.subr.bf16.mxu0 0
    %1428 = vmatpush1.bf16.msra.mxu0 0
    %1429 = vmatprep.subr.bf16.mxu0 0
    %1430 = vmatpush1.bf16.msra.mxu0 0
    %1431 = vmatprep.subr.bf16.mxu0 0
    %1432 = vmatpush1.bf16.msra.mxu0 0
    %1433 = vmatprep.subr.bf16.mxu0 0
    %1434 = vmatpush1.bf16.msra.mxu0 0
    %1435 = vmatprep.mubr.bf16.mxu0 0
    %1436 = vmatmul.mubr.bf16.gmra.mrb[0].mxu0 %v1401
    %v1437 = vpop.f32.mrb[0].mxu0
    %v1438 = vadd.f32 %v1386, %v1437
    %v1439 = vpop.f32.mrb[0].mxu0
    %v1440 = vpop.f32.mrb[0].mxu0
    %v1441 = vadd.f32 %v1386, %v1440
    %v1442 = vpop.f32.mrb[0].mxu0
    %1443 = vdwg.mxu0
    %1444 = vmatprep.subr.bf16.mxu0 0
    %1445 = vmatpush1.bf16.msra.mxu0 %v173
    %1446 = vmatprep.subr.bf16.mxu0 0
    %1447 = vmatpush1.bf16.msra.mxu0 %v174
    %1448 = vmatprep.subr.bf16.mxu0 0
    %1449 = vmatpush1.bf16.msra.mxu0 %v175
    %1450 = vmatprep.subr.bf16.mxu0 0
    %1451 = vmatpush1.bf16.msra.mxu0 %v176
    %1452 = vmatprep.subr.bf16.mxu0 0
    %1453 = vmatpush1.bf16.msra.mxu0 0
    %1454 = vmatprep.subr.bf16.mxu0 0
    %1455 = vmatpush1.bf16.msra.mxu0 0
    %1456 = vmatprep.subr.bf16.mxu0 0
    %1457 = vmatpush1.bf16.msra.mxu0 0
    %1458 = vmatprep.subr.bf16.mxu0 0
    %1459 = vmatpush1.bf16.msra.mxu0 0
    %1460 = vmatprep.subr.bf16.mxu0 0
    %1461 = vmatpush1.bf16.msra.mxu0 0
    %1462 = vmatprep.subr.bf16.mxu0 0
    %1463 = vmatpush1.bf16.msra.mxu0 0
    %1464 = vmatprep.subr.bf16.mxu0 0
    %1465 = vmatpush1.bf16.msra.mxu0 0
    %1466 = vmatprep.subr.bf16.mxu0 0
    %1467 = vmatpush1.bf16.msra.mxu0 0
    %1468 = vmatprep.subr.bf16.mxu0 0
    %1469 = vmatpush1.bf16.msra.mxu0 0
    %1470 = vmatprep.subr.bf16.mxu0 0
    %1471 = vmatpush1.bf16.msra.mxu0 0
    %1472 = vmatprep.subr.bf16.mxu0 0
    %1473 = vmatpush1.bf16.msra.mxu0 0
    %1474 = vmatprep.subr.bf16.mxu0 0
    %1475 = vmatpush1.bf16.msra.mxu0 0
    %1476 = vmatprep.mubr.bf16.mxu0 0
    %1477 = vmatmul.mubr.bf16.gmra.mrb[0].mxu0 %v794
    %v1478 = vpop.f32.mrb[0].mxu0
    %v1479 = vadd.f32 0.0, %v1478
    %v1480 = vpop.f32.mrb[0].mxu0
    %v1481 = vpop.f32.mrb[0].mxu0
    %v1482 = vadd.f32 0.0, %v1481
    %v1483 = vpop.f32.mrb[0].mxu0
    %1484 = vdwg.mxu0
    %v1485 = vpack.c.bf16 %v1482, %v1479
    %v1486 = vld [vmem:[#allocation16] sm:$0xf]
    %v1487 = vld [vmem:[#allocation16 + $0x4] sm:$0xf]
    %v1488 = vld [vmem:[#allocation16 + $0x8] sm:$0xf]
    %v1489 = vld [vmem:[#allocation16 + $0xc] sm:$0xf]
    %v1490 = vld [vmem:[#allocation16 + $0x10] sm:$0xf]
    %v1491 = vld [vmem:[#allocation16 + $0x14] sm:$0xf]
    %v1492 = vld [vmem:[#allocation16 + $0x18] sm:$0xf]
    %v1493 = vld [vmem:[#allocation16 + $0x1c] sm:$0xf]
    %v1494 = vld [vmem:[#allocation16 + $0x20] sm:$0xf]
    %v1495 = vld [vmem:[#allocation16 + $0x24] sm:$0xf]
    %v1496 = vld [vmem:[#allocation16 + $0x28] sm:$0xf]
    %v1497 = vld [vmem:[#allocation16 + $0x2c] sm:$0xf]
    %v1498 = vld [vmem:[#allocation16 + $0x30] sm:$0xf]
    %v1499 = vld [vmem:[#allocation16 + $0x34] sm:$0xf]
    %v1500 = vld [vmem:[#allocation16 + $0x38] sm:$0xf]
    %v1501 = vld [vmem:[#allocation16 + $0x3c] sm:$0xf]
    %v1502 = vld [vmem:[#allocation17] sm:$0x1]
    %v1504 = vlaneseq
    %v1505 = vshrl.u32 %v1504, 7
    %v1506 = vsub.s32 0, %v1505
    %v1507 = vrot.slane %v1502, %v1506
    %v1525 = vunpack.c.l.b16 %v1486
    %v1526 = vunpack.c.l.b16 %v1487
    %v1527 = vunpack.c.l.b16 %v1488
    %v1528 = vunpack.c.l.b16 %v1489
    %v1529 = vunpack.c.l.b16 %v1490
    %v1530 = vunpack.c.l.b16 %v1491
    %v1531 = vunpack.c.l.b16 %v1492
    %v1532 = vunpack.c.l.b16 %v1493
    %v1533 = vunpack.c.l.b16 %v1494
    %v1534 = vunpack.c.l.b16 %v1495
    %v1535 = vunpack.c.l.b16 %v1496
    %v1536 = vunpack.c.l.b16 %v1497
    %v1537 = vunpack.c.l.b16 %v1498
    %v1538 = vunpack.c.l.b16 %v1499
    %v1539 = vunpack.c.l.b16 %v1500
    %v1540 = vunpack.c.l.b16 %v1501
    %v1541 = vpack.c.b16 %v1526, %v1525
    %v1542 = vpack.c.b16 %v1528, %v1527
    %v1543 = vpack.c.b16 %v1530, %v1529
    %v1544 = vpack.c.b16 %v1532, %v1531
    %v1545 = vpack.c.b16 %v1534, %v1533
    %v1546 = vpack.c.b16 %v1536, %v1535
    %v1547 = vpack.c.b16 %v1538, %v1537
    %v1548 = vpack.c.b16 %v1540, %v1539
    %1557 = vmatprep.subr.bf16.mxu0 0
    %1558 = vmatpush1.bf16.msra.mxu0 %v1541
    %1559 = vmatprep.subr.bf16.mxu0 0
    %1560 = vmatpush1.bf16.msra.mxu0 %v1542
    %1561 = vmatprep.subr.bf16.mxu0 0
    %1562 = vmatpush1.bf16.msra.mxu0 %v1543
    %1563 = vmatprep.subr.bf16.mxu0 0
    %1564 = vmatpush1.bf16.msra.mxu0 %v1544
    %1565 = vmatprep.subr.bf16.mxu0 0
    %1566 = vmatpush1.bf16.msra.mxu0 %v1545
    %1567 = vmatprep.subr.bf16.mxu0 0
    %1568 = vmatpush1.bf16.msra.mxu0 %v1546
    %1569 = vmatprep.subr.bf16.mxu0 0
    %1570 = vmatpush1.bf16.msra.mxu0 %v1547
    %1571 = vmatprep.subr.bf16.mxu0 0
    %1572 = vmatpush1.bf16.msra.mxu0 %v1548
    %1573 = vmatprep.subr.bf16.mxu0 0
    %1574 = vmatpush1.bf16.msra.mxu0 0
    %1575 = vmatprep.subr.bf16.mxu0 0
    %1576 = vmatpush1.bf16.msra.mxu0 0
    %1577 = vmatprep.subr.bf16.mxu0 0
    %1578 = vmatpush1.bf16.msra.mxu0 0
    %1579 = vmatprep.subr.bf16.mxu0 0
    %1580 = vmatpush1.bf16.msra.mxu0 0
    %1581 = vmatprep.subr.bf16.mxu0 0
    %1582 = vmatpush1.bf16.msra.mxu0 0
    %1583 = vmatprep.subr.bf16.mxu0 0
    %1584 = vmatpush1.bf16.msra.mxu0 0
    %1585 = vmatprep.subr.bf16.mxu0 0
    %1586 = vmatpush1.bf16.msra.mxu0 0
    %1587 = vmatprep.subr.bf16.mxu0 0
    %1588 = vmatpush1.bf16.msra.mxu0 0
    %1589 = vmatprep.mubr.bf16.mxu0 0
    %1590 = vmatmul.mubr.bf16.gmra.mrb[0].mxu0 %v1485
    %v1591 = vpop.f32.mrb[0].mxu0
    %v1592 = vadd.f32 %v1507, %v1591
    %v1593 = vpop.f32.mrb[0].mxu0
    %v1594 = vpop.f32.mrb[0].mxu0
    %v1595 = vadd.f32 %v1507, %v1594
    %v1596 = vpop.f32.mrb[0].mxu0
    %1597 = vdwg.mxu0
    %v1598 = vadd.f32 %v1438, %v1592
    %v1599 = vadd.f32 %v1441, %v1595
    %v1600 = vmax.f32 %v1598, 0.0
    %v1601 = vmax.f32 %v1599, 0.0
    %1602 = vst [vmem:[#allocation19] sm:$0xff] %v1600
    %1603 = vst [vmem:[#allocation19 + $0x8] sm:$0xff] %v1601
    // Predicated region
    $region82: #{tpu_custom_call.1} parent=1 // pred_check
      _
    $region83: #{tpu_custom_call.1} parent=1 // pred_check_branch
      %1605 = sbr.rel (0) target = $region85
    $region84: #{tpu_custom_call.1} parent=1 // pred_region
      %s1607 = ssub.s32 256, 256
      %1608 = vsyncadd [#allocation4], %s1607
      %s1609 = sshll.u32 [#allocation19], 4
      %s1610 = int_to_ptr.vmem [resolvable:$true] %s1609
      %1615 = dma.vmem_to_hbm [thread:$0]  %s1610, 256, %s10, [#allocation4], 128, 128, 8
    $region85: #{tpu_custom_call.1} parent=1 // pred_fallthru
      _
    // Predicated region
    $region86: #{tpu_custom_call.1} parent=1 // pred_check
      _
    $region87: #{tpu_custom_call.1} parent=1 // pred_check_branch
      %1617 = sbr.rel (0) target = $region89
    $region88: #{tpu_custom_call.1} parent=1 // pred_region
      %1618 = dma.done [#allocation4], 256
    $region89: #{tpu_custom_call.1} parent=1 // pred_fallthru
      _
    %1619 = vsyncpa [#allocation3], 1
    %1620 = vsyncpa [#allocation6], 1
    %1621 = vsyncpa [#allocation9], 1
    %1622 = vsyncpa [#allocation12], 1
    %1623 = vsyncpa [#allocation15], 1
    %1624 = vsyncpa [#allocation18], 1
    %1625 = vsyncpa [#allocation4], 1

</llo_original>
